<compile_context>
chip_gen: v7x
topology: tpu7x:2x2x1
jax: 0.10.0
libtpu: 0.0.40
codegen_flags: <defaults>
</compile_context>

<pallas_src>
import functools
import math

import jax
import jax.numpy as jnp
from jax.experimental import pallas as pl
from jax.experimental.pallas import tpu as pltpu

ALPHA = 2.0                      # BijELU alpha
LOG_ALPHA = math.log(ALPHA)


# ---------------------------------------------------------------------------
# Pallas kernel: depthwise causal conv (+ optional BijELU) on (H, W, BC) slabs
# ---------------------------------------------------------------------------
def _invconv_kernel(x_ref, w_ref, z_ref, ladj_ref, xp_ref, *,
                    kh, kw, h_strip, mode, activated):
    # x_ref    : (H,  W,  BCt)   unpadded input slab (BC tile on lanes)
    # w_ref    : (kh, kw, BCt)   per-(b,c) conv kernels
    # z_ref    : (H,  W,  BCt)   output slab
    # ladj_ref : (1,  BCt)       per-(b,c) log-abs-det contribution (lane-dense)
    # xp_ref   : (Hp, Wp, BCt)   VMEM scratch holding the triangularly padded slab
    h, w, bct = z_ref.shape
    hp, wp, _ = xp_ref.shape
    hpad, wpad = kh - 1, kw - 1

    if mode == "UL":
        oi, oj = hpad, wpad
    elif mode == "UR":
        oi, oj = hpad, 0
    elif mode == "LL":
        oi, oj = 0, wpad
    else:  # LR
        oi, oj = 0, 0

    # --- fused triangular zero-pad (no separate HBM pass) ------------------
    # The border is re-zeroed every grid step (it is tiny), which keeps the
    # kernel correct even when the "parallel" BC axis is sharded across cores.
    if hpad > 0:
        r0 = 0 if oi > 0 else h
        xp_ref[r0:r0 + hpad, :, :] = jnp.zeros((hpad, wp, bct), xp_ref.dtype)
    if wpad > 0:
        c0 = 0 if oj > 0 else w
        xp_ref[:, c0:c0 + wpad, :] = jnp.zeros((hp, wpad, bct), xp_ref.dtype)
    xp_ref[oi:oi + h, oj:oj + w, :] = x_ref[...]

    ladj_ref[...] = jnp.zeros_like(ladj_ref)

    # Per-tap weights as (1, 1, BCt) lane vectors, hoisted out of the strip loop.
    taps = [[w_ref[di:di + 1, dj:dj + 1, :].astype(jnp.float32)
             for dj in range(kw)] for di in range(kh)]

    n_strips = h // h_strip

    def strip_body(s, carry):
        row0 = pl.multiple_of(s * h_strip, h_strip)
        acc = jnp.zeros((h_strip, w, bct), jnp.float32)
        # shift-and-accumulate: di -> major-axis offset, dj -> sublane offset,
        # BC stays fixed on lanes (no cross-lane movement).
        for di in range(kh):
            for dj in range(kw):
                xs = xp_ref[pl.ds(row0 + di, h_strip), dj:dj + w, :]
                acc = acc + xs.astype(jnp.float32) * taps[di][dj]
        if activated:
            neg = acc < 0.0
            # BijELU exactly as in the reference torch module:
            #   ladj += x * log(alpha)      for x < 0   (pre-activation x)
            #   z     = alpha * (exp(x)-1)  for x < 0
            contrib = jnp.sum(jnp.where(neg, acc * LOG_ALPHA, 0.0), axis=(0, 1))
            ladj_ref[...] += contrib.reshape(1, bct)
            zval = jnp.where(neg, ALPHA * (jnp.exp(acc) - 1.0), acc)
        else:
            zval = acc
        z_ref[pl.ds(row0, h_strip), :, :] = zval.astype(z_ref.dtype)
        return carry

    jax.lax.fori_loop(0, n_strips, strip_body, 0, unroll=True)


# ---------------------------------------------------------------------------
# Plain-JAX glue reproducing the torch module bookkeeping
# ---------------------------------------------------------------------------
def kern_net(kernel, context_flat, Wc, Wk):
    """Synthetic deterministic stand-in for the user-supplied `kern_net`.

    kernel: (kh*kw - 1,), context_flat: (BC, ctx_dim) -> (BC, kh*kw - 1)."""
    return jnp.tanh(context_flat @ Wc + kernel @ Wk)


def conv_kern(w_net, kh, kw, mode):
    """Fill the masked kernel positions with `w_net`; the masked-out corner = 1.

    Matches torch: ck = ones; ck[:, mask] = w (row-major fill)."""
    bc = w_net.shape[0]
    if mode == "UL":
        zi, zj = kh - 1, kw - 1
    elif mode == "UR":
        zi, zj = kh - 1, 0
    elif mode == "LL":
        zi, zj = 0, kw - 1
    else:  # LR
        zi, zj = 0, 0
    zpos = zi * kw + zj
    one_col = jnp.ones((bc, 1), w_net.dtype)
    flat = jnp.concatenate([w_net[:, :zpos], one_col, w_net[:, zpos:]], axis=1)
    return flat.reshape(bc, kh, kw)


def _triang_pad_ref(x_bc_hw, kh, kw, mode):
    """Reference-only pad (the Pallas path fuses the pad into the kernel)."""
    hpad, wpad = kh - 1, kw - 1
    if mode == "UL":
        pads = ((hpad, 0), (wpad, 0))
    elif mode == "UR":
        pads = ((hpad, 0), (0, wpad))
    elif mode == "LL":
        pads = ((0, hpad), (wpad, 0))
    else:  # LR
        pads = ((0, hpad), (0, wpad))
    return jnp.pad(x_bc_hw, ((0, 0),) + pads)


def invconv_forward(x, kernel, context, Wc, Wk, *, kh, kw, mode="UL", act=False):
    """Forward pass of InvConv.  x: (b, c, h, w) NCHW. Returns (z, ladj)."""
    b, c, h, w = x.shape
    bc = b * c
    context_flat = context.reshape(bc, -1)

    w_net = kern_net(kernel, context_flat, Wc, Wk)       # (BC, kh*kw - 1)
    weights = conv_kern(w_net, kh, kw, mode)             # (BC, kh, kw)

    # --- channels-last relayout: BC -> lanes, padded to a multiple of 128 ---
    bcp = ((bc + 127) // 128) * 128
    x_cl = jnp.transpose(x.reshape(bc, h, w), (1, 2, 0))          # (H, W, BC)
    x_cl = jnp.pad(x_cl, ((0, 0), (0, 0), (0, bcp - bc)))
    w_cl = jnp.transpose(weights, (1, 2, 0))                      # (kh, kw, BC)
    w_cl = jnp.pad(w_cl, ((0, 0), (0, 0), (0, bcp - bc)))

    hpad, wpad = kh - 1, kw - 1
    hp, wp = h + hpad, w + wpad

    # --- BC tile sizing vs. a conservative VMEM budget (v7x: 64 MiB phys) ---
    # Double-buffered x-in + z-out + weights + ladj blocks, plus the padded
    # VMEM scratch (single-buffered).
    bytes_per_128_lanes = 4 * 128 * (4 * h * w + hp * wp + 2 * kh * kw + 2)
    budget = 20 * 1024 * 1024
    bc_tile = max(1, budget // bytes_per_128_lanes) * 128
    bc_tile = max(128, min(bc_tile, bcp))
    while bcp % bc_tile:
        bc_tile -= 128
    grid = (bcp // bc_tile,)

    # --- H strip so (acc strip + one tap slice) stays well inside the vregs ---
    max_rows = max(1, (64 * 1024) // (w * bc_tile * 4))
    h_strip = 1
    for d in range(1, h + 1):
        if h % d == 0 and d <= max_rows:
            h_strip = d

    flops = 2 * bcp * h * w * kh * kw
    transcendentals = bcp * h * w if act else 0
    bytes_accessed = 4 * (x_cl.size + w_cl.size + h * w * bcp + bcp)

    kernel_fn = functools.partial(_invconv_kernel, kh=kh, kw=kw,
                                  h_strip=h_strip, mode=mode, activated=act)

    z_cl, ladj_row = pl.pallas_call(
        kernel_fn,
        out_shape=(
            jax.ShapeDtypeStruct((h, w, bcp), x.dtype),
            jax.ShapeDtypeStruct((1, bcp), jnp.float32),
        ),
        grid=grid,
        in_specs=[
            pl.BlockSpec((h, w, bc_tile), lambda i: (0, 0, i)),
            pl.BlockSpec((kh, kw, bc_tile), lambda i: (0, 0, i)),
        ],
        out_specs=(
            pl.BlockSpec((h, w, bc_tile), lambda i: (0, 0, i)),
            pl.BlockSpec((1, bc_tile), lambda i: (0, i)),
        ),
        scratch_shapes=[pltpu.VMEM((hp, wp, bc_tile), x.dtype)],
        compiler_params=pltpu.CompilerParams(
            dimension_semantics=("parallel",),
            vmem_limit_bytes=32 * 1024 * 1024,
        ),
        cost_estimate=pl.CostEstimate(
            flops=flops,
            transcendentals=transcendentals,
            bytes_accessed=bytes_accessed,
        ),
    )(x_cl, w_cl)

    z = jnp.transpose(z_cl[:, :, :bc], (2, 0, 1)).reshape(b, c, h, w)
    ladj = ladj_row[0, :bc].reshape(b, c).sum(axis=1)   # zeros(b) when act=False
    return z, ladj


# ---------------------------------------------------------------------------
def make_params(key, kh, kw, ctx_dim):
    k1, k2, k3 = jax.random.split(key, 3)
    m = kh * kw - 1
    kernel = jax.random.normal(k1, (m,), jnp.float32)   # nn.Parameter(randn(params_k - ks[0]))
    Wc = 0.1 * jax.random.normal(k2, (ctx_dim, m), jnp.float32)
    Wk = 0.1 * jax.random.normal(k3, (m, m), jnp.float32)
    return kernel, Wc, Wk


if __name__ == "__main__":
    key = jax.random.PRNGKey(0)
    b, c, h, w = 2, 4, 16, 16
    kh, kw = 3, 3          # kernel_sz = (1, 3, 3)
    ctx_dim = 8
    mode = "UL"

    kx, kc, kp = jax.random.split(key, 3)
    x = jax.random.normal(kx, (b, c, h, w), jnp.float32)
    context = jax.random.normal(kc, (b, c, ctx_dim), jnp.float32)
    kernel, Wc, Wk = make_params(kp, kh, kw, ctx_dim)

    fwd = jax.jit(functools.partial(invconv_forward, kh=kh, kw=kw, mode=mode, act=False))
    fwd_act = jax.jit(functools.partial(invconv_forward, kh=kh, kw=kw, mode=mode, act=True))

    z, ladj = fwd(x, kernel, context, Wc, Wk)
    z_act, ladj_act = fwd_act(x, kernel, context, Wc, Wk)
    jax.block_until_ready((z, ladj, z_act, ladj_act))

    # ---- Pure-JAX reference (lax depthwise conv == torch F.conv2d, groups=b*c)
    bc = b * c
    w_net = kern_net(kernel, context.reshape(bc, -1), Wc, Wk)
    weights = conv_kern(w_net, kh, kw, mode)
    xp = _triang_pad_ref(x.reshape(bc, h, w), kh, kw, mode)
    z_conv = jax.lax.conv_general_dilated(
        xp[None],                               # (1, BC, Hp, Wp)
        weights[:, None],                       # (BC, 1, kh, kw)
        window_strides=(1, 1), padding="VALID",
        dimension_numbers=("NCHW", "OIHW", "NCHW"),
        feature_group_count=bc,
    ).reshape(b, c, h, w)

    # act=False path
    assert jnp.allclose(z, z_conv, atol=1e-4, rtol=1e-4)
    assert ladj.shape == (b,) and jnp.allclose(ladj, jnp.zeros((b,)))

    # act=True path (BijELU reference, exactly as in the torch module)
    neg = z_conv < 0
    z_ref_act = jnp.where(neg, ALPHA * (jnp.exp(z_conv) - 1.0), z_conv)
    ladj_ref_act = jnp.where(neg, z_conv * LOG_ALPHA, 0.0).sum(axis=(1, 2, 3))
    assert jnp.allclose(z_act, z_ref_act, atol=1e-4, rtol=1e-4)
    assert jnp.allclose(ladj_act, ladj_ref_act, atol=1e-3, rtol=1e-4)

    print("KERNEL_OK")
</pallas_src>

<mosaic_0001>
module attributes {stable_mosaic.version = 11 : i64} {
  func.func @_invconv_kernel(%arg0: i32, %arg1: memref<16x16x128xf32, #tpu.memory_space<vmem>>, %arg2: memref<3x3x128xf32, #tpu.memory_space<vmem>>, %arg3: memref<16x16x128xf32, #tpu.memory_space<vmem>>, %arg4: memref<1x128xf32, #tpu.memory_space<vmem>>, %arg5: memref<18x18x128xf32, #tpu.memory_space<vmem>>) attributes {dimension_semantics = [#tpu.dimension_semantics<parallel>], iteration_bounds = array<i64: 1>, scalar_prefetch = 0 : i64, scratch_operands = 1 : i64, tpu.core_type = #tpu.core_type<tc>, window_params = [{transform_indices = @transform_0, window_bounds = array<i64: 16, 16, 128>}, {transform_indices = @transform_1, window_bounds = array<i64: 3, 3, 128>}, {transform_indices = @transform_2, window_bounds = array<i64: 16, 16, 128>}, {transform_indices = @transform_3, window_bounds = array<i64: 1, 128>}]} {
    %cst = arith.constant 0.000000e+00 : f32
    %0 = vector.broadcast %cst : f32 to vector<2x18x128xf32>
    %c0 = arith.constant 0 : index
    %c0_0 = arith.constant 0 : index
    %c0_1 = arith.constant 0 : index
    %1 = vector.load %arg5[%c0, %c0_0, %c0_1] : memref<18x18x128xf32, #tpu.memory_space<vmem>>, vector<2x18x128xf32>
    tpu.vector_store %arg5[%c0, %c0_0, %c0_1], %0 {strides = array<i32>} : memref<18x18x128xf32, #tpu.memory_space<vmem>>, vector<2x18x128xf32>,
    %cst_2 = arith.constant 0.000000e+00 : f32
    %2 = vector.broadcast %cst_2 : f32 to vector<18x2x128xf32>
    %c0_3 = arith.constant 0 : index
    %c0_4 = arith.constant 0 : index
    %c0_5 = arith.constant 0 : index
    %3 = vector.load %arg5[%c0_3, %c0_4, %c0_5] : memref<18x18x128xf32, #tpu.memory_space<vmem>>, vector<18x2x128xf32>
    tpu.vector_store %arg5[%c0_3, %c0_4, %c0_5], %2 {strides = array<i32>} : memref<18x18x128xf32, #tpu.memory_space<vmem>>, vector<18x2x128xf32>,
    %c0_6 = arith.constant 0 : index
    %c0_7 = arith.constant 0 : index
    %c0_8 = arith.constant 0 : index
    %4 = vector.load %arg1[%c0_6, %c0_7, %c0_8] : memref<16x16x128xf32, #tpu.memory_space<vmem>>, vector<16x16x128xf32>
    %c2 = arith.constant 2 : index
    %c2_9 = arith.constant 2 : index
    %c0_10 = arith.constant 0 : index
    %5 = vector.load %arg5[%c2, %c2_9, %c0_10] : memref<18x18x128xf32, #tpu.memory_space<vmem>>, vector<16x16x128xf32>
    tpu.vector_store %arg5[%c2, %c2_9, %c0_10], %4 {strides = array<i32>} : memref<18x18x128xf32, #tpu.memory_space<vmem>>, vector<16x16x128xf32>,
    %cst_11 = arith.constant 0.000000e+00 : f32
    %6 = vector.broadcast %cst_11 : f32 to vector<1x128xf32>
    %c0_12 = arith.constant 0 : index
    %c0_13 = arith.constant 0 : index
    %7 = vector.load %arg4[%c0_12, %c0_13] : memref<1x128xf32, #tpu.memory_space<vmem>>, vector<1x128xf32>
    tpu.vector_store %arg4[%c0_12, %c0_13], %6 {strides = array<i32>} : memref<1x128xf32, #tpu.memory_space<vmem>>, vector<1x128xf32>,
    %c0_14 = arith.constant 0 : index
    %c0_15 = arith.constant 0 : index
    %c0_16 = arith.constant 0 : index
    %8 = vector.load %arg2[%c0_14, %c0_15, %c0_16] : memref<3x3x128xf32, #tpu.memory_space<vmem>>, vector<1x1x128xf32>
    %c0_17 = arith.constant 0 : index
    %c1 = arith.constant 1 : index
    %c0_18 = arith.constant 0 : index
    %9 = vector.load %arg2[%c0_17, %c1, %c0_18] : memref<3x3x128xf32, #tpu.memory_space<vmem>>, vector<1x1x128xf32>
    %c0_19 = arith.constant 0 : index
    %c2_20 = arith.constant 2 : index
    %c0_21 = arith.constant 0 : index
    %10 = vector.load %arg2[%c0_19, %c2_20, %c0_21] : memref<3x3x128xf32, #tpu.memory_space<vmem>>, vector<1x1x128xf32>
    %c1_22 = arith.constant 1 : index
    %c0_23 = arith.constant 0 : index
    %c0_24 = arith.constant 0 : index
    %11 = vector.load %arg2[%c1_22, %c0_23, %c0_24] : memref<3x3x128xf32, #tpu.memory_space<vmem>>, vector<1x1x128xf32>
    %c1_25 = arith.constant 1 : index
    %c1_26 = arith.constant 1 : index
    %c0_27 = arith.constant 0 : index
    %12 = vector.load %arg2[%c1_25, %c1_26, %c0_27] : memref<3x3x128xf32, #tpu.memory_space<vmem>>, vector<1x1x128xf32>
    %c1_28 = arith.constant 1 : index
    %c2_29 = arith.constant 2 : index
    %c0_30 = arith.constant 0 : index
    %13 = vector.load %arg2[%c1_28, %c2_29, %c0_30] : memref<3x3x128xf32, #tpu.memory_space<vmem>>, vector<1x1x128xf32>
    %c2_31 = arith.constant 2 : index
    %c0_32 = arith.constant 0 : index
    %c0_33 = arith.constant 0 : index
    %14 = vector.load %arg2[%c2_31, %c0_32, %c0_33] : memref<3x3x128xf32, #tpu.memory_space<vmem>>, vector<1x1x128xf32>
    %c2_34 = arith.constant 2 : index
    %c1_35 = arith.constant 1 : index
    %c0_36 = arith.constant 0 : index
    %15 = vector.load %arg2[%c2_34, %c1_35, %c0_36] : memref<3x3x128xf32, #tpu.memory_space<vmem>>, vector<1x1x128xf32>
    %c2_37 = arith.constant 2 : index
    %c2_38 = arith.constant 2 : index
    %c0_39 = arith.constant 0 : index
    %16 = vector.load %arg2[%c2_37, %c2_38, %c0_39] : memref<3x3x128xf32, #tpu.memory_space<vmem>>, vector<1x1x128xf32>
    %c0_i32 = arith.constant 0 : i32
    %c8_i32 = arith.constant 8 : i32
    %17 = arith.muli %c0_i32, %c8_i32 : i32
    %18 = tpu.assume_multiple %17, 8 : i32
    %cst_40 = arith.constant 0.000000e+00 : f32
    %19 = vector.broadcast %cst_40 : f32 to vector<8x16x128xf32>
    %c0_i32_41 = arith.constant 0 : i32
    %20 = arith.addi %18, %c0_i32_41 : i32
    %21 = arith.index_cast %20 : i32 to index
    %c0_42 = arith.constant 0 : index
    %c0_43 = arith.constant 0 : index
    %22 = vector.load %arg5[%21, %c0_42, %c0_43] : memref<18x18x128xf32, #tpu.memory_space<vmem>>, vector<8x16x128xf32>
    %23 = vector.broadcast %8 : vector<1x1x128xf32> to vector<8x16x128xf32>
    %24 = arith.mulf %22, %23 : vector<8x16x128xf32>
    %25 = arith.addf %19, %24 : vector<8x16x128xf32>
    %c0_i32_44 = arith.constant 0 : i32
    %26 = arith.addi %18, %c0_i32_44 : i32
    %27 = arith.index_cast %26 : i32 to index
    %c1_45 = arith.constant 1 : index
    %c0_46 = arith.constant 0 : index
    %28 = vector.load %arg5[%27, %c1_45, %c0_46] : memref<18x18x128xf32, #tpu.memory_space<vmem>>, vector<8x16x128xf32>
    %29 = vector.broadcast %9 : vector<1x1x128xf32> to vector<8x16x128xf32>
    %30 = arith.mulf %28, %29 : vector<8x16x128xf32>
    %31 = arith.addf %25, %30 : vector<8x16x128xf32>
    %c0_i32_47 = arith.constant 0 : i32
    %32 = arith.addi %18, %c0_i32_47 : i32
    %33 = arith.index_cast %32 : i32 to index
    %c2_48 = arith.constant 2 : index
    %c0_49 = arith.constant 0 : index
    %34 = vector.load %arg5[%33, %c2_48, %c0_49] : memref<18x18x128xf32, #tpu.memory_space<vmem>>, vector<8x16x128xf32>
    %35 = vector.broadcast %10 : vector<1x1x128xf32> to vector<8x16x128xf32>
    %36 = arith.mulf %34, %35 : vector<8x16x128xf32>
    %37 = arith.addf %31, %36 : vector<8x16x128xf32>
    %c1_i32 = arith.constant 1 : i32
    %38 = arith.addi %18, %c1_i32 : i32
    %39 = arith.index_cast %38 : i32 to index
    %c0_50 = arith.constant 0 : index
    %c0_51 = arith.constant 0 : index
    %40 = vector.load %arg5[%39, %c0_50, %c0_51] : memref<18x18x128xf32, #tpu.memory_space<vmem>>, vector<8x16x128xf32>
    %41 = vector.broadcast %11 : vector<1x1x128xf32> to vector<8x16x128xf32>
    %42 = arith.mulf %40, %41 : vector<8x16x128xf32>
    %43 = arith.addf %37, %42 : vector<8x16x128xf32>
    %c1_i32_52 = arith.constant 1 : i32
    %44 = arith.addi %18, %c1_i32_52 : i32
    %45 = arith.index_cast %44 : i32 to index
    %c1_53 = arith.constant 1 : index
    %c0_54 = arith.constant 0 : index
    %46 = vector.load %arg5[%45, %c1_53, %c0_54] : memref<18x18x128xf32, #tpu.memory_space<vmem>>, vector<8x16x128xf32>
    %47 = vector.broadcast %12 : vector<1x1x128xf32> to vector<8x16x128xf32>
    %48 = arith.mulf %46, %47 : vector<8x16x128xf32>
    %49 = arith.addf %43, %48 : vector<8x16x128xf32>
    %c1_i32_55 = arith.constant 1 : i32
    %50 = arith.addi %18, %c1_i32_55 : i32
    %51 = arith.index_cast %50 : i32 to index
    %c2_56 = arith.constant 2 : index
    %c0_57 = arith.constant 0 : index
    %52 = vector.load %arg5[%51, %c2_56, %c0_57] : memref<18x18x128xf32, #tpu.memory_space<vmem>>, vector<8x16x128xf32>
    %53 = vector.broadcast %13 : vector<1x1x128xf32> to vector<8x16x128xf32>
    %54 = arith.mulf %52, %53 : vector<8x16x128xf32>
    %55 = arith.addf %49, %54 : vector<8x16x128xf32>
    %c2_i32 = arith.constant 2 : i32
    %56 = arith.addi %18, %c2_i32 : i32
    %57 = arith.index_cast %56 : i32 to index
    %c0_58 = arith.constant 0 : index
    %c0_59 = arith.constant 0 : index
    %58 = vector.load %arg5[%57, %c0_58, %c0_59] : memref<18x18x128xf32, #tpu.memory_space<vmem>>, vector<8x16x128xf32>
    %59 = vector.broadcast %14 : vector<1x1x128xf32> to vector<8x16x128xf32>
    %60 = arith.mulf %58, %59 : vector<8x16x128xf32>
    %61 = arith.addf %55, %60 : vector<8x16x128xf32>
    %c2_i32_60 = arith.constant 2 : i32
    %62 = arith.addi %18, %c2_i32_60 : i32
    %63 = arith.index_cast %62 : i32 to index
    %c1_61 = arith.constant 1 : index
    %c0_62 = arith.constant 0 : index
    %64 = vector.load %arg5[%63, %c1_61, %c0_62] : memref<18x18x128xf32, #tpu.memory_space<vmem>>, vector<8x16x128xf32>
    %65 = vector.broadcast %15 : vector<1x1x128xf32> to vector<8x16x128xf32>
    %66 = arith.mulf %64, %65 : vector<8x16x128xf32>
    %67 = arith.addf %61, %66 : vector<8x16x128xf32>
    %c2_i32_63 = arith.constant 2 : i32
    %68 = arith.addi %18, %c2_i32_63 : i32
    %69 = arith.index_cast %68 : i32 to index
    %c2_64 = arith.constant 2 : index
    %c0_65 = arith.constant 0 : index
    %70 = vector.load %arg5[%69, %c2_64, %c0_65] : memref<18x18x128xf32, #tpu.memory_space<vmem>>, vector<8x16x128xf32>
    %71 = vector.broadcast %16 : vector<1x1x128xf32> to vector<8x16x128xf32>
    %72 = arith.mulf %70, %71 : vector<8x16x128xf32>
    %73 = arith.addf %67, %72 : vector<8x16x128xf32>
    %74 = arith.index_cast %18 : i32 to index
    %c0_66 = arith.constant 0 : index
    %c0_67 = arith.constant 0 : index
    %75 = vector.load %arg3[%74, %c0_66, %c0_67] : memref<16x16x128xf32, #tpu.memory_space<vmem>>, vector<8x16x128xf32>
    tpu.vector_store %arg3[%74, %c0_66, %c0_67], %73 {strides = array<i32>} : memref<16x16x128xf32, #tpu.memory_space<vmem>>, vector<8x16x128xf32>,
    %c1_i32_68 = arith.constant 1 : i32
    %c8_i32_69 = arith.constant 8 : i32
    %76 = arith.muli %c1_i32_68, %c8_i32_69 : i32
    %77 = tpu.assume_multiple %76, 8 : i32
    %cst_70 = arith.constant 0.000000e+00 : f32
    %78 = vector.broadcast %cst_70 : f32 to vector<8x16x128xf32>
    %c0_i32_71 = arith.constant 0 : i32
    %79 = arith.addi %77, %c0_i32_71 : i32
    %80 = arith.index_cast %79 : i32 to index
    %c0_72 = arith.constant 0 : index
    %c0_73 = arith.constant 0 : index
    %81 = vector.load %arg5[%80, %c0_72, %c0_73] : memref<18x18x128xf32, #tpu.memory_space<vmem>>, vector<8x16x128xf32>
    %82 = vector.broadcast %8 : vector<1x1x128xf32> to vector<8x16x128xf32>
    %83 = arith.mulf %81, %82 : vector<8x16x128xf32>
    %84 = arith.addf %78, %83 : vector<8x16x128xf32>
    %c0_i32_74 = arith.constant 0 : i32
    %85 = arith.addi %77, %c0_i32_74 : i32
    %86 = arith.index_cast %85 : i32 to index
    %c1_75 = arith.constant 1 : index
    %c0_76 = arith.constant 0 : index
    %87 = vector.load %arg5[%86, %c1_75, %c0_76] : memref<18x18x128xf32, #tpu.memory_space<vmem>>, vector<8x16x128xf32>
    %88 = vector.broadcast %9 : vector<1x1x128xf32> to vector<8x16x128xf32>
    %89 = arith.mulf %87, %88 : vector<8x16x128xf32>
    %90 = arith.addf %84, %89 : vector<8x16x128xf32>
    %c0_i32_77 = arith.constant 0 : i32
    %91 = arith.addi %77, %c0_i32_77 : i32
    %92 = arith.index_cast %91 : i32 to index
    %c2_78 = arith.constant 2 : index
    %c0_79 = arith.constant 0 : index
    %93 = vector.load %arg5[%92, %c2_78, %c0_79] : memref<18x18x128xf32, #tpu.memory_space<vmem>>, vector<8x16x128xf32>
    %94 = vector.broadcast %10 : vector<1x1x128xf32> to vector<8x16x128xf32>
    %95 = arith.mulf %93, %94 : vector<8x16x128xf32>
    %96 = arith.addf %90, %95 : vector<8x16x128xf32>
    %c1_i32_80 = arith.constant 1 : i32
    %97 = arith.addi %77, %c1_i32_80 : i32
    %98 = arith.index_cast %97 : i32 to index
    %c0_81 = arith.constant 0 : index
    %c0_82 = arith.constant 0 : index
    %99 = vector.load %arg5[%98, %c0_81, %c0_82] : memref<18x18x128xf32, #tpu.memory_space<vmem>>, vector<8x16x128xf32>
    %100 = vector.broadcast %11 : vector<1x1x128xf32> to vector<8x16x128xf32>
    %101 = arith.mulf %99, %100 : vector<8x16x128xf32>
    %102 = arith.addf %96, %101 : vector<8x16x128xf32>
    %c1_i32_83 = arith.constant 1 : i32
    %103 = arith.addi %77, %c1_i32_83 : i32
    %104 = arith.index_cast %103 : i32 to index
    %c1_84 = arith.constant 1 : index
    %c0_85 = arith.constant 0 : index
    %105 = vector.load %arg5[%104, %c1_84, %c0_85] : memref<18x18x128xf32, #tpu.memory_space<vmem>>, vector<8x16x128xf32>
    %106 = vector.broadcast %12 : vector<1x1x128xf32> to vector<8x16x128xf32>
    %107 = arith.mulf %105, %106 : vector<8x16x128xf32>
    %108 = arith.addf %102, %107 : vector<8x16x128xf32>
    %c1_i32_86 = arith.constant 1 : i32
    %109 = arith.addi %77, %c1_i32_86 : i32
    %110 = arith.index_cast %109 : i32 to index
    %c2_87 = arith.constant 2 : index
    %c0_88 = arith.constant 0 : index
    %111 = vector.load %arg5[%110, %c2_87, %c0_88] : memref<18x18x128xf32, #tpu.memory_space<vmem>>, vector<8x16x128xf32>
    %112 = vector.broadcast %13 : vector<1x1x128xf32> to vector<8x16x128xf32>
    %113 = arith.mulf %111, %112 : vector<8x16x128xf32>
    %114 = arith.addf %108, %113 : vector<8x16x128xf32>
    %c2_i32_89 = arith.constant 2 : i32
    %115 = arith.addi %77, %c2_i32_89 : i32
    %116 = arith.index_cast %115 : i32 to index
    %c0_90 = arith.constant 0 : index
    %c0_91 = arith.constant 0 : index
    %117 = vector.load %arg5[%116, %c0_90, %c0_91] : memref<18x18x128xf32, #tpu.memory_space<vmem>>, vector<8x16x128xf32>
    %118 = vector.broadcast %14 : vector<1x1x128xf32> to vector<8x16x128xf32>
    %119 = arith.mulf %117, %118 : vector<8x16x128xf32>
    %120 = arith.addf %114, %119 : vector<8x16x128xf32>
    %c2_i32_92 = arith.constant 2 : i32
    %121 = arith.addi %77, %c2_i32_92 : i32
    %122 = arith.index_cast %121 : i32 to index
    %c1_93 = arith.constant 1 : index
    %c0_94 = arith.constant 0 : index
    %123 = vector.load %arg5[%122, %c1_93, %c0_94] : memref<18x18x128xf32, #tpu.memory_space<vmem>>, vector<8x16x128xf32>
    %124 = vector.broadcast %15 : vector<1x1x128xf32> to vector<8x16x128xf32>
    %125 = arith.mulf %123, %124 : vector<8x16x128xf32>
    %126 = arith.addf %120, %125 : vector<8x16x128xf32>
    %c2_i32_95 = arith.constant 2 : i32
    %127 = arith.addi %77, %c2_i32_95 : i32
    %128 = arith.index_cast %127 : i32 to index
    %c2_96 = arith.constant 2 : index
    %c0_97 = arith.constant 0 : index
    %129 = vector.load %arg5[%128, %c2_96, %c0_97] : memref<18x18x128xf32, #tpu.memory_space<vmem>>, vector<8x16x128xf32>
    %130 = vector.broadcast %16 : vector<1x1x128xf32> to vector<8x16x128xf32>
    %131 = arith.mulf %129, %130 : vector<8x16x128xf32>
    %132 = arith.addf %126, %131 : vector<8x16x128xf32>
    %133 = arith.index_cast %77 : i32 to index
    %c0_98 = arith.constant 0 : index
    %c0_99 = arith.constant 0 : index
    %134 = vector.load %arg3[%133, %c0_98, %c0_99] : memref<16x16x128xf32, #tpu.memory_space<vmem>>, vector<8x16x128xf32>
    tpu.vector_store %arg3[%133, %c0_98, %c0_99], %132 {strides = array<i32>} : memref<16x16x128xf32, #tpu.memory_space<vmem>>, vector<8x16x128xf32>,
    %c2_i32_100 = arith.constant 2 : i32
    return
  }
  func.func @transform_0(%arg0: i32) -> (i32, i32, i32) {
    %c0_i32 = arith.constant 0 : i32
    %c0_i32_0 = arith.constant 0 : i32
    %c0_i32_1 = arith.constant 0 : i32
    return %c0_i32, %c0_i32_0, %arg0 : i32, i32, i32
  }
  func.func @transform_1(%arg0: i32) -> (i32, i32, i32) {
    %c0_i32 = arith.constant 0 : i32
    %c0_i32_0 = arith.constant 0 : i32
    %c0_i32_1 = arith.constant 0 : i32
    return %c0_i32, %c0_i32_0, %arg0 : i32, i32, i32
  }
  func.func @transform_2(%arg0: i32) -> (i32, i32, i32) {
    %c0_i32 = arith.constant 0 : i32
    %c0_i32_0 = arith.constant 0 : i32
    %c0_i32_1 = arith.constant 0 : i32
    return %c0_i32, %c0_i32_0, %arg0 : i32, i32, i32
  }
  func.func @transform_3(%arg0: i32) -> (i32, i32) {
    %c0_i32 = arith.constant 0 : i32
    %c0_i32_0 = arith.constant 0 : i32
    return %c0_i32, %arg0 : i32, i32
  }
}

</mosaic_0001>

<llo_original>
// kernel: squeeze.1
$region0: #{squeeze.1}
  %s0 = inlined_call_operand.vmem [shape: f32[8], index: 0, kind: input, shape index: {}]
  %s1 = inlined_call_operand.vmem [shape: f32[2,4], index: 1, kind: output, shape index: {}]
  $region1: #{squeeze.1} parent=0
    #allocation0 [shape = 'u8[4096]{0}', space=vmem, size = 0x1000, scoped, tag = 'scoped mem for output reshape']
    #allocation1 [shape = 'u8[4096]{0}', space=vmem, size = 0x1000, scoped, tag = 'scoped mem for input reshape']
    %s3 = sshllo.u32 0, 1
    %v4 = vld [vmem:[%s0] sm:%s3]
    %5 = vst [vmem:[#allocation1] sm:%s3] %v4
    %v6 = vld [vmem:[#allocation1] sm:$0x1]
    %vm7 = vcmask 31744
    %8 = vst.msk [vmem:[#allocation0] sm:$0x1] %vm7, %v6
    %v9 = vld [vmem:[#allocation1] sm:$0x1]
    %10 = vrot.lane.b32.xlu0 %v9, 124
    %v11 = vpop.permute.xlu0 %10
    %vm12 = vcmask 31744
    %s13 = scalar_lea.vmem [#allocation0], 1
    %14 = vst.msk [vmem:[%s13] sm:$0x1] %vm12, %v11
    %s16 = sshllo.u32 0, 2
    %v18 = vld [vmem:[#allocation0] sm:%s16]
    %s19 = sshllo.u32 0, 2
    %20 = vst [vmem:[%s1] sm:%s19] %v18

// kernel: invconv_forward.1
$region0: #{invconv_forward.1}
  #allocation0 [shape = 'u32[]', space=smem, size = 0x4, offset = 0x4, fixed_abs, tag = 'smem constant byte address 0x4 - core index']
  #allocation1 [shape = 'u32[144,128]{1,0:T(1,128)}', space=vmem, size = 0x12000, scoped, tag = 'internal scratch']
  #allocation2 [shape = 'f32[18,18,128]{2,1,0:T(8,128)}', space=vmem, size = 0x36000, scoped, tag = 'scratch operand']
  %s0 = inlined_call_operand.vmem [shape: f32[16,16,128], index: 0, kind: input, shape index: {}]
  %s1 = inlined_call_operand.vmem [shape: f32[3,3,128], index: 1, kind: input, shape index: {}]
  %s2 = inlined_call_operand.vmem [shape: f32[16,16,128], index: 2, kind: output, shape index: {0}]
  %s3 = inlined_call_operand.vmem [shape: f32[1,128], index: 3, kind: output, shape index: {1}]
  %4 = xla_tuple %s2, %s3
  %s5 = sld [smem:[#allocation0]]
  $region26: #{invconv_forward.1} parent=0
    _
  %s7 = ssub.s32 1, %s5
  %s8 = scalar_select 0, %s7, %s5
  // Predicated region
  $region2: #{invconv_forward.1} parent=0 // pred_check
    _
  $region3: #{invconv_forward.1} parent=0 // pred_check_branch
    %10 = sbr.rel (0) target = $region5
  $region4: #{invconv_forward.1} parent=0 // pred_region
    _
  $region5: #{invconv_forward.1} parent=0 // pred_fallthru
    _
  // Predicated region
  $region6: #{invconv_forward.1} parent=0 // pred_check
    _
  $region7: #{invconv_forward.1} parent=0 // pred_check_branch
    %12 = sbr.rel (0) target = $region9
  $region8: #{invconv_forward.1} parent=0 // pred_region
    _
  $region9: #{invconv_forward.1} parent=0 // pred_fallthru
    _
  %13 = vst [vmem:[#allocation2] sm:$0xff] 0.0
  %14 = vst [vmem:[#allocation2 + $0x8] sm:$0xff] 0.0
  %15 = vst [vmem:[#allocation2 + $0x10] sm:$0x3] 0.0
  %16 = vst [vmem:[#allocation2 + $0x18] sm:$0xff] 0.0
  %17 = vst [vmem:[#allocation2 + $0x20] sm:$0xff] 0.0
  %18 = vst [vmem:[#allocation2 + $0x28] sm:$0x3] 0.0
  %19 = vst [vmem:[#allocation2] sm:$0x3] 0.0
  %20 = vst [vmem:[#allocation2 + $0x18] sm:$0x3] 0.0
  %21 = vst [vmem:[#allocation2 + $0x30] sm:$0x3] 0.0
  %22 = vst [vmem:[#allocation2 + $0x48] sm:$0x3] 0.0
  %23 = vst [vmem:[#allocation2 + $0x60] sm:$0x3] 0.0
  %24 = vst [vmem:[#allocation2 + $0x78] sm:$0x3] 0.0
  %25 = vst [vmem:[#allocation2 + $0x90] sm:$0x3] 0.0
  %26 = vst [vmem:[#allocation2 + $0xa8] sm:$0x3] 0.0
  %27 = vst [vmem:[#allocation2 + $0xc0] sm:$0x3] 0.0
  %28 = vst [vmem:[#allocation2 + $0xd8] sm:$0x3] 0.0
  %29 = vst [vmem:[#allocation2 + $0xf0] sm:$0x3] 0.0
  %30 = vst [vmem:[#allocation2 + $0x108] sm:$0x3] 0.0
  %31 = vst [vmem:[#allocation2 + $0x120] sm:$0x3] 0.0
  %32 = vst [vmem:[#allocation2 + $0x138] sm:$0x3] 0.0
  %33 = vst [vmem:[#allocation2 + $0x150] sm:$0x3] 0.0
  %34 = vst [vmem:[#allocation2 + $0x168] sm:$0x3] 0.0
  %35 = vst [vmem:[#allocation2 + $0x180] sm:$0x3] 0.0
  %36 = vst [vmem:[#allocation2 + $0x198] sm:$0x3] 0.0
  %v37 = vld [vmem:[%s0] sm:$0xff]
  %v38 = vld [vmem:[%s0 + $0x8] sm:$0xff]
  %v39 = vld [vmem:[%s0 + $0x10] sm:$0xff]
  %v40 = vld [vmem:[%s0 + $0x18] sm:$0xff]
  %v41 = vld [vmem:[%s0 + $0x20] sm:$0xff]
  %v42 = vld [vmem:[%s0 + $0x28] sm:$0xff]
  %v43 = vld [vmem:[%s0 + $0x30] sm:$0xff]
  %v44 = vld [vmem:[%s0 + $0x38] sm:$0xff]
  %v45 = vld [vmem:[%s0 + $0x40] sm:$0xff]
  %v46 = vld [vmem:[%s0 + $0x48] sm:$0xff]
  %v47 = vld [vmem:[%s0 + $0x50] sm:$0xff]
  %v48 = vld [vmem:[%s0 + $0x58] sm:$0xff]
  %v49 = vld [vmem:[%s0 + $0x60] sm:$0xff]
  %v50 = vld [vmem:[%s0 + $0x68] sm:$0xff]
  %v51 = vld [vmem:[%s0 + $0x70] sm:$0xff]
  %v52 = vld [vmem:[%s0 + $0x78] sm:$0xff]
  %v53 = vld [vmem:[%s0 + $0x80] sm:$0xff]
  %v54 = vld [vmem:[%s0 + $0x88] sm:$0xff]
  %v55 = vld [vmem:[%s0 + $0x90] sm:$0xff]
  %v56 = vld [vmem:[%s0 + $0x98] sm:$0xff]
  %v57 = vld [vmem:[%s0 + $0xa0] sm:$0xff]
  %v58 = vld [vmem:[%s0 + $0xa8] sm:$0xff]
  %v59 = vld [vmem:[%s0 + $0xb0] sm:$0xff]
  %v60 = vld [vmem:[%s0 + $0xb8] sm:$0xff]
  %v61 = vld [vmem:[%s0 + $0xc0] sm:$0xff]
  %v62 = vld [vmem:[%s0 + $0xc8] sm:$0xff]
  %v63 = vld [vmem:[%s0 + $0xd0] sm:$0xff]
  %v64 = vld [vmem:[%s0 + $0xd8] sm:$0xff]
  %v65 = vld [vmem:[%s0 + $0xe0] sm:$0xff]
  %v66 = vld [vmem:[%s0 + $0xe8] sm:$0xff]
  %v67 = vld [vmem:[%s0 + $0xf0] sm:$0xff]
  %v68 = vld [vmem:[%s0 + $0xf8] sm:$0xff]
  %s69 = scalar_lea.vmem [#allocation2], 48
  %70 = vst [vmem:[%s69 + $0x2] sm:$0xff] %v37
  %71 = vst [vmem:[%s69 + $0xa] sm:$0xff] %v38
  %72 = vst [vmem:[%s69 + $0x1a] sm:$0xff] %v39
  %73 = vst [vmem:[%s69 + $0x22] sm:$0xff] %v40
  %74 = vst [vmem:[%s69 + $0x32] sm:$0xff] %v41
  %75 = vst [vmem:[%s69 + $0x3a] sm:$0xff] %v42
  %76 = vst [vmem:[%s69 + $0x4a] sm:$0xff] %v43
  %77 = vst [vmem:[%s69 + $0x52] sm:$0xff] %v44
  %78 = vst [vmem:[%s69 + $0x62] sm:$0xff] %v45
  %79 = vst [vmem:[%s69 + $0x6a] sm:$0xff] %v46
  %80 = vst [vmem:[%s69 + $0x7a] sm:$0xff] %v47
  %81 = vst [vmem:[%s69 + $0x82] sm:$0xff] %v48
  %82 = vst [vmem:[%s69 + $0x92] sm:$0xff] %v49
  %83 = vst [vmem:[%s69 + $0x9a] sm:$0xff] %v50
  %84 = vst [vmem:[%s69 + $0xaa] sm:$0xff] %v51
  %85 = vst [vmem:[%s69 + $0xb2] sm:$0xff] %v52
  %86 = vst [vmem:[%s69 + $0xc2] sm:$0xff] %v53
  %87 = vst [vmem:[%s69 + $0xca] sm:$0xff] %v54
  %88 = vst [vmem:[%s69 + $0xda] sm:$0xff] %v55
  %89 = vst [vmem:[%s69 + $0xe2] sm:$0xff] %v56
  %90 = vst [vmem:[%s69 + $0xf2] sm:$0xff] %v57
  %91 = vst [vmem:[%s69 + $0xfa] sm:$0xff] %v58
  %92 = vst [vmem:[%s69 + $0x10a] sm:$0xff] %v59
  %93 = vst [vmem:[%s69 + $0x112] sm:$0xff] %v60
  %94 = vst [vmem:[%s69 + $0x122] sm:$0xff] %v61
  %95 = vst [vmem:[%s69 + $0x12a] sm:$0xff] %v62
  %96 = vst [vmem:[%s69 + $0x13a] sm:$0xff] %v63
  %97 = vst [vmem:[%s69 + $0x142] sm:$0xff] %v64
  %98 = vst [vmem:[%s69 + $0x152] sm:$0xff] %v65
  %99 = vst [vmem:[%s69 + $0x15a] sm:$0xff] %v66
  %100 = vst [vmem:[%s69 + $0x16a] sm:$0xff] %v67
  %101 = vst [vmem:[%s69 + $0x172] sm:$0xff] %v68
  %102 = vst [vmem:[%s3] sm:$0x1] 0.0
  %v103 = vld [vmem:[%s1] sm:$0x1]
  %v104 = vld [vmem:[%s1 + $0x1] sm:$0x1]
  %v105 = vld [vmem:[%s1 + $0x2] sm:$0x1]
  %s106 = scalar_lea.vmem %s1, 4
  %v107 = vld [vmem:[%s106] sm:$0x1]
  %v108 = vld [vmem:[%s106 + $0x1] sm:$0x1]
  %v109 = vld [vmem:[%s106 + $0x2] sm:$0x1]
  %s110 = scalar_lea.vmem %s1, 8
  %v111 = vld [vmem:[%s110] sm:$0x1]
  %v112 = vld [vmem:[%s110 + $0x1] sm:$0x1]
  %v113 = vld [vmem:[%s110 + $0x2] sm:$0x1]
  %s114 = smul.u32 0, 24
  %s115 = scalar_lea.vmem [#allocation2], %s114
  %v116 = vld [vmem:[%s115] sm:$0xff]
  %v117 = vld [vmem:[%s115 + $0x8] sm:$0xff]
  %v118 = vld [vmem:[%s115 + $0x18] sm:$0xff]
  %v119 = vld [vmem:[%s115 + $0x20] sm:$0xff]
  %v120 = vld [vmem:[%s115 + $0x30] sm:$0xff]
  %v121 = vld [vmem:[%s115 + $0x38] sm:$0xff]
  %v122 = vld [vmem:[%s115 + $0x48] sm:$0xff]
  %v123 = vld [vmem:[%s115 + $0x50] sm:$0xff]
  %v124 = vld [vmem:[%s115 + $0x60] sm:$0xff]
  %v125 = vld [vmem:[%s115 + $0x68] sm:$0xff]
  %v126 = vld [vmem:[%s115 + $0x78] sm:$0xff]
  %v127 = vld [vmem:[%s115 + $0x80] sm:$0xff]
  %v128 = vld [vmem:[%s115 + $0x90] sm:$0xff]
  %v129 = vld [vmem:[%s115 + $0x98] sm:$0xff]
  %v130 = vld [vmem:[%s115 + $0xa8] sm:$0xff]
  %v131 = vld [vmem:[%s115 + $0xb0] sm:$0xff]
  %v132 = vlaneseq
  %v133 = vshrl.u32 %v132, 7
  %v134 = vsub.s32 0, %v133
  %v135 = vrot.slane %v103, %v134
  %v136 = vmul.f32 %v116, %v135
  %v137 = vmul.f32 %v117, %v135
  %v138 = vmul.f32 %v118, %v135
  %v139 = vmul.f32 %v119, %v135
  %v140 = vmul.f32 %v120, %v135
  %v141 = vmul.f32 %v121, %v135
  %v142 = vmul.f32 %v122, %v135
  %v143 = vmul.f32 %v123, %v135
  %v144 = vmul.f32 %v124, %v135
  %v145 = vmul.f32 %v125, %v135
  %v146 = vmul.f32 %v126, %v135
  %v147 = vmul.f32 %v127, %v135
  %v148 = vmul.f32 %v128, %v135
  %v149 = vmul.f32 %v129, %v135
  %v150 = vmul.f32 %v130, %v135
  %v151 = vmul.f32 %v131, %v135
  %v152 = vadd.f32 %v136, 0.0
  %v153 = vadd.f32 %v137, 0.0
  %v154 = vadd.f32 %v138, 0.0
  %v155 = vadd.f32 %v139, 0.0
  %v156 = vadd.f32 %v140, 0.0
  %v157 = vadd.f32 %v141, 0.0
  %v158 = vadd.f32 %v142, 0.0
  %v159 = vadd.f32 %v143, 0.0
  %v160 = vadd.f32 %v144, 0.0
  %v161 = vadd.f32 %v145, 0.0
  %v162 = vadd.f32 %v146, 0.0
  %v163 = vadd.f32 %v147, 0.0
  %v164 = vadd.f32 %v148, 0.0
  %v165 = vadd.f32 %v149, 0.0
  %v166 = vadd.f32 %v150, 0.0
  %v167 = vadd.f32 %v151, 0.0
  %v168 = vld [vmem:[%s115 + $0x1] sm:$0xff]
  %v169 = vld [vmem:[%s115 + $0x9] sm:$0xff]
  %v170 = vld [vmem:[%s115 + $0x19] sm:$0xff]
  %v171 = vld [vmem:[%s115 + $0x21] sm:$0xff]
  %v172 = vld [vmem:[%s115 + $0x31] sm:$0xff]
  %v173 = vld [vmem:[%s115 + $0x39] sm:$0xff]
  %v174 = vld [vmem:[%s115 + $0x49] sm:$0xff]
  %v175 = vld [vmem:[%s115 + $0x51] sm:$0xff]
  %v176 = vld [vmem:[%s115 + $0x61] sm:$0xff]
  %v177 = vld [vmem:[%s115 + $0x69] sm:$0xff]
  %v178 = vld [vmem:[%s115 + $0x79] sm:$0xff]
  %v179 = vld [vmem:[%s115 + $0x81] sm:$0xff]
  %v180 = vld [vmem:[%s115 + $0x91] sm:$0xff]
  %v181 = vld [vmem:[%s115 + $0x99] sm:$0xff]
  %v182 = vld [vmem:[%s115 + $0xa9] sm:$0xff]
  %v183 = vld [vmem:[%s115 + $0xb1] sm:$0xff]
  %v184 = vlaneseq
  %v185 = vshrl.u32 %v184, 7
  %v186 = vsub.s32 0, %v185
  %v187 = vrot.slane %v104, %v186
  %v188 = vmul.f32 %v168, %v187
  %v189 = vmul.f32 %v169, %v187
  %v190 = vmul.f32 %v170, %v187
  %v191 = vmul.f32 %v171, %v187
  %v192 = vmul.f32 %v172, %v187
  %v193 = vmul.f32 %v173, %v187
  %v194 = vmul.f32 %v174, %v187
  %v195 = vmul.f32 %v175, %v187
  %v196 = vmul.f32 %v176, %v187
  %v197 = vmul.f32 %v177, %v187
  %v198 = vmul.f32 %v178, %v187
  %v199 = vmul.f32 %v179, %v187
  %v200 = vmul.f32 %v180, %v187
  %v201 = vmul.f32 %v181, %v187
  %v202 = vmul.f32 %v182, %v187
  %v203 = vmul.f32 %v183, %v187
  %v204 = vadd.f32 %v152, %v188
  %v205 = vadd.f32 %v153, %v189
  %v206 = vadd.f32 %v154, %v190
  %v207 = vadd.f32 %v155, %v191
  %v208 = vadd.f32 %v156, %v192
  %v209 = vadd.f32 %v157, %v193
  %v210 = vadd.f32 %v158, %v194
  %v211 = vadd.f32 %v159, %v195
  %v212 = vadd.f32 %v160, %v196
  %v213 = vadd.f32 %v161, %v197
  %v214 = vadd.f32 %v162, %v198
  %v215 = vadd.f32 %v163, %v199
  %v216 = vadd.f32 %v164, %v200
  %v217 = vadd.f32 %v165, %v201
  %v218 = vadd.f32 %v166, %v202
  %v219 = vadd.f32 %v167, %v203
  %v220 = vld [vmem:[%s115 + $0x2] sm:$0xff]
  %v221 = vld [vmem:[%s115 + $0xa] sm:$0xff]
  %v222 = vld [vmem:[%s115 + $0x1a] sm:$0xff]
  %v223 = vld [vmem:[%s115 + $0x22] sm:$0xff]
  %v224 = vld [vmem:[%s115 + $0x32] sm:$0xff]
  %v225 = vld [vmem:[%s115 + $0x3a] sm:$0xff]
  %v226 = vld [vmem:[%s115 + $0x4a] sm:$0xff]
  %v227 = vld [vmem:[%s115 + $0x52] sm:$0xff]
  %v228 = vld [vmem:[%s115 + $0x62] sm:$0xff]
  %v229 = vld [vmem:[%s115 + $0x6a] sm:$0xff]
  %v230 = vld [vmem:[%s115 + $0x7a] sm:$0xff]
  %v231 = vld [vmem:[%s115 + $0x82] sm:$0xff]
  %v232 = vld [vmem:[%s115 + $0x92] sm:$0xff]
  %v233 = vld [vmem:[%s115 + $0x9a] sm:$0xff]
  %v234 = vld [vmem:[%s115 + $0xaa] sm:$0xff]
  %v235 = vld [vmem:[%s115 + $0xb2] sm:$0xff]
  %v236 = vlaneseq
  %v237 = vshrl.u32 %v236, 7
  %v238 = vsub.s32 0, %v237
  %v239 = vrot.slane %v105, %v238
  %v240 = vmul.f32 %v220, %v239
  %v241 = vmul.f32 %v221, %v239
  %v242 = vmul.f32 %v222, %v239
  %v243 = vmul.f32 %v223, %v239
  %v244 = vmul.f32 %v224, %v239
  %v245 = vmul.f32 %v225, %v239
  %v246 = vmul.f32 %v226, %v239
  %v247 = vmul.f32 %v227, %v239
  %v248 = vmul.f32 %v228, %v239
  %v249 = vmul.f32 %v229, %v239
  %v250 = vmul.f32 %v230, %v239
  %v251 = vmul.f32 %v231, %v239
  %v252 = vmul.f32 %v232, %v239
  %v253 = vmul.f32 %v233, %v239
  %v254 = vmul.f32 %v234, %v239
  %v255 = vmul.f32 %v235, %v239
  %v256 = vadd.f32 %v204, %v240
  %v257 = vadd.f32 %v205, %v241
  %v258 = vadd.f32 %v206, %v242
  %v259 = vadd.f32 %v207, %v243
  %v260 = vadd.f32 %v208, %v244
  %v261 = vadd.f32 %v209, %v245
  %v262 = vadd.f32 %v210, %v246
  %v263 = vadd.f32 %v211, %v247
  %v264 = vadd.f32 %v212, %v248
  %v265 = vadd.f32 %v213, %v249
  %v266 = vadd.f32 %v214, %v250
  %v267 = vadd.f32 %v215, %v251
  %v268 = vadd.f32 %v216, %v252
  %v269 = vadd.f32 %v217, %v253
  %v270 = vadd.f32 %v218, %v254
  %v271 = vadd.f32 %v219, %v255
  %s272 = sadd.s32 0, 1
  %s273 = smul.u32 %s272, 24
  %s274 = scalar_lea.vmem [#allocation2], %s273
  %v275 = vld [vmem:[%s274] sm:$0xff]
  %v276 = vld [vmem:[%s274 + $0x8] sm:$0xff]
  %v277 = vld [vmem:[%s274 + $0x18] sm:$0xff]
  %v278 = vld [vmem:[%s274 + $0x20] sm:$0xff]
  %v279 = vld [vmem:[%s274 + $0x30] sm:$0xff]
  %v280 = vld [vmem:[%s274 + $0x38] sm:$0xff]
  %v281 = vld [vmem:[%s274 + $0x48] sm:$0xff]
  %v282 = vld [vmem:[%s274 + $0x50] sm:$0xff]
  %v283 = vld [vmem:[%s274 + $0x60] sm:$0xff]
  %v284 = vld [vmem:[%s274 + $0x68] sm:$0xff]
  %v285 = vld [vmem:[%s274 + $0x78] sm:$0xff]
  %v286 = vld [vmem:[%s274 + $0x80] sm:$0xff]
  %v287 = vld [vmem:[%s274 + $0x90] sm:$0xff]
  %v288 = vld [vmem:[%s274 + $0x98] sm:$0xff]
  %v289 = vld [vmem:[%s274 + $0xa8] sm:$0xff]
  %v290 = vld [vmem:[%s274 + $0xb0] sm:$0xff]
  %v291 = vlaneseq
  %v292 = vshrl.u32 %v291, 7
  %v293 = vsub.s32 0, %v292
  %v294 = vrot.slane %v107, %v293
  %v295 = vmul.f32 %v275, %v294
  %v296 = vmul.f32 %v276, %v294
  %v297 = vmul.f32 %v277, %v294
  %v298 = vmul.f32 %v278, %v294
  %v299 = vmul.f32 %v279, %v294
  %v300 = vmul.f32 %v280, %v294
  %v301 = vmul.f32 %v281, %v294
  %v302 = vmul.f32 %v282, %v294
  %v303 = vmul.f32 %v283, %v294
  %v304 = vmul.f32 %v284, %v294
  %v305 = vmul.f32 %v285, %v294
  %v306 = vmul.f32 %v286, %v294
  %v307 = vmul.f32 %v287, %v294
  %v308 = vmul.f32 %v288, %v294
  %v309 = vmul.f32 %v289, %v294
  %v310 = vmul.f32 %v290, %v294
  %v311 = vadd.f32 %v256, %v295
  %v312 = vadd.f32 %v257, %v296
  %v313 = vadd.f32 %v258, %v297
  %v314 = vadd.f32 %v259, %v298
  %v315 = vadd.f32 %v260, %v299
  %v316 = vadd.f32 %v261, %v300
  %v317 = vadd.f32 %v262, %v301
  %v318 = vadd.f32 %v263, %v302
  %v319 = vadd.f32 %v264, %v303
  %v320 = vadd.f32 %v265, %v304
  %v321 = vadd.f32 %v266, %v305
  %v322 = vadd.f32 %v267, %v306
  %v323 = vadd.f32 %v268, %v307
  %v324 = vadd.f32 %v269, %v308
  %v325 = vadd.f32 %v270, %v309
  %v326 = vadd.f32 %v271, %v310
  %v327 = vld [vmem:[%s274 + $0x1] sm:$0xff]
  %v328 = vld [vmem:[%s274 + $0x9] sm:$0xff]
  %v329 = vld [vmem:[%s274 + $0x19] sm:$0xff]
  %v330 = vld [vmem:[%s274 + $0x21] sm:$0xff]
  %v331 = vld [vmem:[%s274 + $0x31] sm:$0xff]
  %v332 = vld [vmem:[%s274 + $0x39] sm:$0xff]
  %v333 = vld [vmem:[%s274 + $0x49] sm:$0xff]
  %v334 = vld [vmem:[%s274 + $0x51] sm:$0xff]
  %v335 = vld [vmem:[%s274 + $0x61] sm:$0xff]
  %v336 = vld [vmem:[%s274 + $0x69] sm:$0xff]
  %v337 = vld [vmem:[%s274 + $0x79] sm:$0xff]
  %v338 = vld [vmem:[%s274 + $0x81] sm:$0xff]
  %v339 = vld [vmem:[%s274 + $0x91] sm:$0xff]
  %v340 = vld [vmem:[%s274 + $0x99] sm:$0xff]
  %v341 = vld [vmem:[%s274 + $0xa9] sm:$0xff]
  %v342 = vld [vmem:[%s274 + $0xb1] sm:$0xff]
  %v343 = vlaneseq
  %v344 = vshrl.u32 %v343, 7
  %v345 = vsub.s32 0, %v344
  %v346 = vrot.slane %v108, %v345
  %v347 = vmul.f32 %v327, %v346
  %v348 = vmul.f32 %v328, %v346
  %v349 = vmul.f32 %v329, %v346
  %v350 = vmul.f32 %v330, %v346
  %v351 = vmul.f32 %v331, %v346
  %v352 = vmul.f32 %v332, %v346
  %v353 = vmul.f32 %v333, %v346
  %v354 = vmul.f32 %v334, %v346
  %v355 = vmul.f32 %v335, %v346
  %v356 = vmul.f32 %v336, %v346
  %v357 = vmul.f32 %v337, %v346
  %v358 = vmul.f32 %v338, %v346
  %v359 = vmul.f32 %v339, %v346
  %v360 = vmul.f32 %v340, %v346
  %v361 = vmul.f32 %v341, %v346
  %v362 = vmul.f32 %v342, %v346
  %v363 = vadd.f32 %v311, %v347
  %v364 = vadd.f32 %v312, %v348
  %v365 = vadd.f32 %v313, %v349
  %v366 = vadd.f32 %v314, %v350
  %v367 = vadd.f32 %v315, %v351
  %v368 = vadd.f32 %v316, %v352
  %v369 = vadd.f32 %v317, %v353
  %v370 = vadd.f32 %v318, %v354
  %v371 = vadd.f32 %v319, %v355
  %v372 = vadd.f32 %v320, %v356
  %v373 = vadd.f32 %v321, %v357
  %v374 = vadd.f32 %v322, %v358
  %v375 = vadd.f32 %v323, %v359
  %v376 = vadd.f32 %v324, %v360
  %v377 = vadd.f32 %v325, %v361
  %v378 = vadd.f32 %v326, %v362
  %v379 = vld [vmem:[%s274 + $0x2] sm:$0xff]
  %v380 = vld [vmem:[%s274 + $0xa] sm:$0xff]
  %v381 = vld [vmem:[%s274 + $0x1a] sm:$0xff]
  %v382 = vld [vmem:[%s274 + $0x22] sm:$0xff]
  %v383 = vld [vmem:[%s274 + $0x32] sm:$0xff]
  %v384 = vld [vmem:[%s274 + $0x3a] sm:$0xff]
  %v385 = vld [vmem:[%s274 + $0x4a] sm:$0xff]
  %v386 = vld [vmem:[%s274 + $0x52] sm:$0xff]
  %v387 = vld [vmem:[%s274 + $0x62] sm:$0xff]
  %v388 = vld [vmem:[%s274 + $0x6a] sm:$0xff]
  %v389 = vld [vmem:[%s274 + $0x7a] sm:$0xff]
  %v390 = vld [vmem:[%s274 + $0x82] sm:$0xff]
  %v391 = vld [vmem:[%s274 + $0x92] sm:$0xff]
  %v392 = vld [vmem:[%s274 + $0x9a] sm:$0xff]
  %v393 = vld [vmem:[%s274 + $0xaa] sm:$0xff]
  %v394 = vld [vmem:[%s274 + $0xb2] sm:$0xff]
  %v395 = vlaneseq
  %v396 = vshrl.u32 %v395, 7
  %v397 = vsub.s32 0, %v396
  %v398 = vrot.slane %v109, %v397
  %v399 = vmul.f32 %v379, %v398
  %v400 = vmul.f32 %v380, %v398
  %v401 = vmul.f32 %v381, %v398
  %v402 = vmul.f32 %v382, %v398
  %v403 = vmul.f32 %v383, %v398
  %v404 = vmul.f32 %v384, %v398
  %v405 = vmul.f32 %v385, %v398
  %v406 = vmul.f32 %v386, %v398
  %v407 = vmul.f32 %v387, %v398
  %v408 = vmul.f32 %v388, %v398
  %v409 = vmul.f32 %v389, %v398
  %v410 = vmul.f32 %v390, %v398
  %v411 = vmul.f32 %v391, %v398
  %v412 = vmul.f32 %v392, %v398
  %v413 = vmul.f32 %v393, %v398
  %v414 = vmul.f32 %v394, %v398
  %v415 = vadd.f32 %v363, %v399
  %v416 = vadd.f32 %v364, %v400
  %v417 = vadd.f32 %v365, %v401
  %v418 = vadd.f32 %v366, %v402
  %v419 = vadd.f32 %v367, %v403
  %v420 = vadd.f32 %v368, %v404
  %v421 = vadd.f32 %v369, %v405
  %v422 = vadd.f32 %v370, %v406
  %v423 = vadd.f32 %v371, %v407
  %v424 = vadd.f32 %v372, %v408
  %v425 = vadd.f32 %v373, %v409
  %v426 = vadd.f32 %v374, %v410
  %v427 = vadd.f32 %v375, %v411
  %v428 = vadd.f32 %v376, %v412
  %v429 = vadd.f32 %v377, %v413
  %v430 = vadd.f32 %v378, %v414
  %s431 = sadd.s32 0, 2
  %s432 = smul.u32 %s431, 24
  %s433 = scalar_lea.vmem [#allocation2], %s432
  %v434 = vld [vmem:[%s433] sm:$0xff]
  %v435 = vld [vmem:[%s433 + $0x8] sm:$0xff]
  %v436 = vld [vmem:[%s433 + $0x18] sm:$0xff]
  %v437 = vld [vmem:[%s433 + $0x20] sm:$0xff]
  %v438 = vld [vmem:[%s433 + $0x30] sm:$0xff]
  %v439 = vld [vmem:[%s433 + $0x38] sm:$0xff]
  %v440 = vld [vmem:[%s433 + $0x48] sm:$0xff]
  %v441 = vld [vmem:[%s433 + $0x50] sm:$0xff]
  %v442 = vld [vmem:[%s433 + $0x60] sm:$0xff]
  %v443 = vld [vmem:[%s433 + $0x68] sm:$0xff]
  %v444 = vld [vmem:[%s433 + $0x78] sm:$0xff]
  %v445 = vld [vmem:[%s433 + $0x80] sm:$0xff]
  %v446 = vld [vmem:[%s433 + $0x90] sm:$0xff]
  %v447 = vld [vmem:[%s433 + $0x98] sm:$0xff]
  %v448 = vld [vmem:[%s433 + $0xa8] sm:$0xff]
  %v449 = vld [vmem:[%s433 + $0xb0] sm:$0xff]
  %v450 = vlaneseq
  %v451 = vshrl.u32 %v450, 7
  %v452 = vsub.s32 0, %v451
  %v453 = vrot.slane %v111, %v452
  %v454 = vmul.f32 %v434, %v453
  %v455 = vmul.f32 %v435, %v453
  %v456 = vmul.f32 %v436, %v453
  %v457 = vmul.f32 %v437, %v453
  %v458 = vmul.f32 %v438, %v453
  %v459 = vmul.f32 %v439, %v453
  %v460 = vmul.f32 %v440, %v453
  %v461 = vmul.f32 %v441, %v453
  %v462 = vmul.f32 %v442, %v453
  %v463 = vmul.f32 %v443, %v453
  %v464 = vmul.f32 %v444, %v453
  %v465 = vmul.f32 %v445, %v453
  %v466 = vmul.f32 %v446, %v453
  %v467 = vmul.f32 %v447, %v453
  %v468 = vmul.f32 %v448, %v453
  %v469 = vmul.f32 %v449, %v453
  %v470 = vadd.f32 %v415, %v454
  %v471 = vadd.f32 %v416, %v455
  %v472 = vadd.f32 %v417, %v456
  %v473 = vadd.f32 %v418, %v457
  %v474 = vadd.f32 %v419, %v458
  %v475 = vadd.f32 %v420, %v459
  %v476 = vadd.f32 %v421, %v460
  %v477 = vadd.f32 %v422, %v461
  %v478 = vadd.f32 %v423, %v462
  %v479 = vadd.f32 %v424, %v463
  %v480 = vadd.f32 %v425, %v464
  %v481 = vadd.f32 %v426, %v465
  %v482 = vadd.f32 %v427, %v466
  %v483 = vadd.f32 %v428, %v467
  %v484 = vadd.f32 %v429, %v468
  %v485 = vadd.f32 %v430, %v469
  %v486 = vld [vmem:[%s433 + $0x1] sm:$0xff]
  %v487 = vld [vmem:[%s433 + $0x9] sm:$0xff]
  %v488 = vld [vmem:[%s433 + $0x19] sm:$0xff]
  %v489 = vld [vmem:[%s433 + $0x21] sm:$0xff]
  %v490 = vld [vmem:[%s433 + $0x31] sm:$0xff]
  %v491 = vld [vmem:[%s433 + $0x39] sm:$0xff]
  %v492 = vld [vmem:[%s433 + $0x49] sm:$0xff]
  %v493 = vld [vmem:[%s433 + $0x51] sm:$0xff]
  %v494 = vld [vmem:[%s433 + $0x61] sm:$0xff]
  %v495 = vld [vmem:[%s433 + $0x69] sm:$0xff]
  %v496 = vld [vmem:[%s433 + $0x79] sm:$0xff]
  %v497 = vld [vmem:[%s433 + $0x81] sm:$0xff]
  %v498 = vld [vmem:[%s433 + $0x91] sm:$0xff]
  %v499 = vld [vmem:[%s433 + $0x99] sm:$0xff]
  %v500 = vld [vmem:[%s433 + $0xa9] sm:$0xff]
  %v501 = vld [vmem:[%s433 + $0xb1] sm:$0xff]
  %v502 = vlaneseq
  %v503 = vshrl.u32 %v502, 7
  %v504 = vsub.s32 0, %v503
  %v505 = vrot.slane %v112, %v504
  %v506 = vmul.f32 %v486, %v505
  %v507 = vmul.f32 %v487, %v505
  %v508 = vmul.f32 %v488, %v505
  %v509 = vmul.f32 %v489, %v505
  %v510 = vmul.f32 %v490, %v505
  %v511 = vmul.f32 %v491, %v505
  %v512 = vmul.f32 %v492, %v505
  %v513 = vmul.f32 %v493, %v505
  %v514 = vmul.f32 %v494, %v505
  %v515 = vmul.f32 %v495, %v505
  %v516 = vmul.f32 %v496, %v505
  %v517 = vmul.f32 %v497, %v505
  %v518 = vmul.f32 %v498, %v505
  %v519 = vmul.f32 %v499, %v505
  %v520 = vmul.f32 %v500, %v505
  %v521 = vmul.f32 %v501, %v505
  %v522 = vadd.f32 %v470, %v506
  %v523 = vadd.f32 %v471, %v507
  %v524 = vadd.f32 %v472, %v508
  %v525 = vadd.f32 %v473, %v509
  %v526 = vadd.f32 %v474, %v510
  %v527 = vadd.f32 %v475, %v511
  %v528 = vadd.f32 %v476, %v512
  %v529 = vadd.f32 %v477, %v513
  %v530 = vadd.f32 %v478, %v514
  %v531 = vadd.f32 %v479, %v515
  %v532 = vadd.f32 %v480, %v516
  %v533 = vadd.f32 %v481, %v517
  %v534 = vadd.f32 %v482, %v518
  %v535 = vadd.f32 %v483, %v519
  %v536 = vadd.f32 %v484, %v520
  %v537 = vadd.f32 %v485, %v521
  %v538 = vld [vmem:[%s433 + $0x2] sm:$0xff]
  %v539 = vld [vmem:[%s433 + $0xa] sm:$0xff]
  %v540 = vld [vmem:[%s433 + $0x1a] sm:$0xff]
  %v541 = vld [vmem:[%s433 + $0x22] sm:$0xff]
  %v542 = vld [vmem:[%s433 + $0x32] sm:$0xff]
  %v543 = vld [vmem:[%s433 + $0x3a] sm:$0xff]
  %v544 = vld [vmem:[%s433 + $0x4a] sm:$0xff]
  %v545 = vld [vmem:[%s433 + $0x52] sm:$0xff]
  %v546 = vld [vmem:[%s433 + $0x62] sm:$0xff]
  %v547 = vld [vmem:[%s433 + $0x6a] sm:$0xff]
  %v548 = vld [vmem:[%s433 + $0x7a] sm:$0xff]
  %v549 = vld [vmem:[%s433 + $0x82] sm:$0xff]
  %v550 = vld [vmem:[%s433 + $0x92] sm:$0xff]
  %v551 = vld [vmem:[%s433 + $0x9a] sm:$0xff]
  %v552 = vld [vmem:[%s433 + $0xaa] sm:$0xff]
  %v553 = vld [vmem:[%s433 + $0xb2] sm:$0xff]
  %v554 = vlaneseq
  %v555 = vshrl.u32 %v554, 7
  %v556 = vsub.s32 0, %v555
  %v557 = vrot.slane %v113, %v556
  %v558 = vmul.f32 %v538, %v557
  %v559 = vmul.f32 %v539, %v557
  %v560 = vmul.f32 %v540, %v557
  %v561 = vmul.f32 %v541, %v557
  %v562 = vmul.f32 %v542, %v557
  %v563 = vmul.f32 %v543, %v557
  %v564 = vmul.f32 %v544, %v557
  %v565 = vmul.f32 %v545, %v557
  %v566 = vmul.f32 %v546, %v557
  %v567 = vmul.f32 %v547, %v557
  %v568 = vmul.f32 %v548, %v557
  %v569 = vmul.f32 %v549, %v557
  %v570 = vmul.f32 %v550, %v557
  %v571 = vmul.f32 %v551, %v557
  %v572 = vmul.f32 %v552, %v557
  %v573 = vmul.f32 %v553, %v557
  %v574 = vadd.f32 %v522, %v558
  %v575 = vadd.f32 %v523, %v559
  %v576 = vadd.f32 %v524, %v560
  %v577 = vadd.f32 %v525, %v561
  %v578 = vadd.f32 %v526, %v562
  %v579 = vadd.f32 %v527, %v563
  %v580 = vadd.f32 %v528, %v564
  %v581 = vadd.f32 %v529, %v565
  %v582 = vadd.f32 %v530, %v566
  %v583 = vadd.f32 %v531, %v567
  %v584 = vadd.f32 %v532, %v568
  %v585 = vadd.f32 %v533, %v569
  %v586 = vadd.f32 %v534, %v570
  %v587 = vadd.f32 %v535, %v571
  %v588 = vadd.f32 %v536, %v572
  %v589 = vadd.f32 %v537, %v573
  %s590 = smul.u32 0, 16
  %s591 = scalar_lea.vmem %s2, %s590
  %592 = vst [vmem:[%s591] sm:$0xff] %v574
  %593 = vst [vmem:[%s591 + $0x8] sm:$0xff] %v575
  %594 = vst [vmem:[%s591 + $0x10] sm:$0xff] %v576
  %595 = vst [vmem:[%s591 + $0x18] sm:$0xff] %v577
  %596 = vst [vmem:[%s591 + $0x20] sm:$0xff] %v578
  %597 = vst [vmem:[%s591 + $0x28] sm:$0xff] %v579
  %598 = vst [vmem:[%s591 + $0x30] sm:$0xff] %v580
  %599 = vst [vmem:[%s591 + $0x38] sm:$0xff] %v581
  %600 = vst [vmem:[%s591 + $0x40] sm:$0xff] %v582
  %601 = vst [vmem:[%s591 + $0x48] sm:$0xff] %v583
  %602 = vst [vmem:[%s591 + $0x50] sm:$0xff] %v584
  %603 = vst [vmem:[%s591 + $0x58] sm:$0xff] %v585
  %604 = vst [vmem:[%s591 + $0x60] sm:$0xff] %v586
  %605 = vst [vmem:[%s591 + $0x68] sm:$0xff] %v587
  %606 = vst [vmem:[%s591 + $0x70] sm:$0xff] %v588
  %607 = vst [vmem:[%s591 + $0x78] sm:$0xff] %v589
  %s608 = smul.u32 8, 24
  %s609 = scalar_lea.vmem [#allocation2], %s608
  %v610 = vld [vmem:[%s609] sm:$0xff]
  %v611 = vld [vmem:[%s609 + $0x8] sm:$0xff]
  %v612 = vld [vmem:[%s609 + $0x18] sm:$0xff]
  %v613 = vld [vmem:[%s609 + $0x20] sm:$0xff]
  %v614 = vld [vmem:[%s609 + $0x30] sm:$0xff]
  %v615 = vld [vmem:[%s609 + $0x38] sm:$0xff]
  %v616 = vld [vmem:[%s609 + $0x48] sm:$0xff]
  %v617 = vld [vmem:[%s609 + $0x50] sm:$0xff]
  %v618 = vld [vmem:[%s609 + $0x60] sm:$0xff]
  %v619 = vld [vmem:[%s609 + $0x68] sm:$0xff]
  %v620 = vld [vmem:[%s609 + $0x78] sm:$0xff]
  %v621 = vld [vmem:[%s609 + $0x80] sm:$0xff]
  %v622 = vld [vmem:[%s609 + $0x90] sm:$0xff]
  %v623 = vld [vmem:[%s609 + $0x98] sm:$0xff]
  %v624 = vld [vmem:[%s609 + $0xa8] sm:$0xff]
  %v625 = vld [vmem:[%s609 + $0xb0] sm:$0xff]
  %v626 = vmul.f32 %v610, %v135
  %v627 = vmul.f32 %v611, %v135
  %v628 = vmul.f32 %v612, %v135
  %v629 = vmul.f32 %v613, %v135
  %v630 = vmul.f32 %v614, %v135
  %v631 = vmul.f32 %v615, %v135
  %v632 = vmul.f32 %v616, %v135
  %v633 = vmul.f32 %v617, %v135
  %v634 = vmul.f32 %v618, %v135
  %v635 = vmul.f32 %v619, %v135
  %v636 = vmul.f32 %v620, %v135
  %v637 = vmul.f32 %v621, %v135
  %v638 = vmul.f32 %v622, %v135
  %v639 = vmul.f32 %v623, %v135
  %v640 = vmul.f32 %v624, %v135
  %v641 = vmul.f32 %v625, %v135
  %v642 = vadd.f32 %v626, 0.0
  %v643 = vadd.f32 %v627, 0.0
  %v644 = vadd.f32 %v628, 0.0
  %v645 = vadd.f32 %v629, 0.0
  %v646 = vadd.f32 %v630, 0.0
  %v647 = vadd.f32 %v631, 0.0
  %v648 = vadd.f32 %v632, 0.0
  %v649 = vadd.f32 %v633, 0.0
  %v650 = vadd.f32 %v634, 0.0
  %v651 = vadd.f32 %v635, 0.0
  %v652 = vadd.f32 %v636, 0.0
  %v653 = vadd.f32 %v637, 0.0
  %v654 = vadd.f32 %v638, 0.0
  %v655 = vadd.f32 %v639, 0.0
  %v656 = vadd.f32 %v640, 0.0
  %v657 = vadd.f32 %v641, 0.0
  %v658 = vld [vmem:[%s609 + $0x1] sm:$0xff]
  %v659 = vld [vmem:[%s609 + $0x9] sm:$0xff]
  %v660 = vld [vmem:[%s609 + $0x19] sm:$0xff]
  %v661 = vld [vmem:[%s609 + $0x21] sm:$0xff]
  %v662 = vld [vmem:[%s609 + $0x31] sm:$0xff]
  %v663 = vld [vmem:[%s609 + $0x39] sm:$0xff]
  %v664 = vld [vmem:[%s609 + $0x49] sm:$0xff]
  %v665 = vld [vmem:[%s609 + $0x51] sm:$0xff]
  %v666 = vld [vmem:[%s609 + $0x61] sm:$0xff]
  %v667 = vld [vmem:[%s609 + $0x69] sm:$0xff]
  %v668 = vld [vmem:[%s609 + $0x79] sm:$0xff]
  %v669 = vld [vmem:[%s609 + $0x81] sm:$0xff]
  %v670 = vld [vmem:[%s609 + $0x91] sm:$0xff]
  %v671 = vld [vmem:[%s609 + $0x99] sm:$0xff]
  %v672 = vld [vmem:[%s609 + $0xa9] sm:$0xff]
  %v673 = vld [vmem:[%s609 + $0xb1] sm:$0xff]
  %v674 = vmul.f32 %v658, %v187
  %v675 = vmul.f32 %v659, %v187
  %v676 = vmul.f32 %v660, %v187
  %v677 = vmul.f32 %v661, %v187
  %v678 = vmul.f32 %v662, %v187
  %v679 = vmul.f32 %v663, %v187
  %v680 = vmul.f32 %v664, %v187
  %v681 = vmul.f32 %v665, %v187
  %v682 = vmul.f32 %v666, %v187
  %v683 = vmul.f32 %v667, %v187
  %v684 = vmul.f32 %v668, %v187
  %v685 = vmul.f32 %v669, %v187
  %v686 = vmul.f32 %v670, %v187
  %v687 = vmul.f32 %v671, %v187
  %v688 = vmul.f32 %v672, %v187
  %v689 = vmul.f32 %v673, %v187
  %v690 = vadd.f32 %v642, %v674
  %v691 = vadd.f32 %v643, %v675
  %v692 = vadd.f32 %v644, %v676
  %v693 = vadd.f32 %v645, %v677
  %v694 = vadd.f32 %v646, %v678
  %v695 = vadd.f32 %v647, %v679
  %v696 = vadd.f32 %v648, %v680
  %v697 = vadd.f32 %v649, %v681
  %v698 = vadd.f32 %v650, %v682
  %v699 = vadd.f32 %v651, %v683
  %v700 = vadd.f32 %v652, %v684
  %v701 = vadd.f32 %v653, %v685
  %v702 = vadd.f32 %v654, %v686
  %v703 = vadd.f32 %v655, %v687
  %v704 = vadd.f32 %v656, %v688
  %v705 = vadd.f32 %v657, %v689
  %v706 = vld [vmem:[%s609 + $0x2] sm:$0xff]
  %v707 = vld [vmem:[%s609 + $0xa] sm:$0xff]
  %v708 = vld [vmem:[%s609 + $0x1a] sm:$0xff]
  %v709 = vld [vmem:[%s609 + $0x22] sm:$0xff]
  %v710 = vld [vmem:[%s609 + $0x32] sm:$0xff]
  %v711 = vld [vmem:[%s609 + $0x3a] sm:$0xff]
  %v712 = vld [vmem:[%s609 + $0x4a] sm:$0xff]
  %v713 = vld [vmem:[%s609 + $0x52] sm:$0xff]
  %v714 = vld [vmem:[%s609 + $0x62] sm:$0xff]
  %v715 = vld [vmem:[%s609 + $0x6a] sm:$0xff]
  %v716 = vld [vmem:[%s609 + $0x7a] sm:$0xff]
  %v717 = vld [vmem:[%s609 + $0x82] sm:$0xff]
  %v718 = vld [vmem:[%s609 + $0x92] sm:$0xff]
  %v719 = vld [vmem:[%s609 + $0x9a] sm:$0xff]
  %v720 = vld [vmem:[%s609 + $0xaa] sm:$0xff]
  %v721 = vld [vmem:[%s609 + $0xb2] sm:$0xff]
  %v722 = vmul.f32 %v706, %v239
  %v723 = vmul.f32 %v707, %v239
  %v724 = vmul.f32 %v708, %v239
  %v725 = vmul.f32 %v709, %v239
  %v726 = vmul.f32 %v710, %v239
  %v727 = vmul.f32 %v711, %v239
  %v728 = vmul.f32 %v712, %v239
  %v729 = vmul.f32 %v713, %v239
  %v730 = vmul.f32 %v714, %v239
  %v731 = vmul.f32 %v715, %v239
  %v732 = vmul.f32 %v716, %v239
  %v733 = vmul.f32 %v717, %v239
  %v734 = vmul.f32 %v718, %v239
  %v735 = vmul.f32 %v719, %v239
  %v736 = vmul.f32 %v720, %v239
  %v737 = vmul.f32 %v721, %v239
  %v738 = vadd.f32 %v690, %v722
  %v739 = vadd.f32 %v691, %v723
  %v740 = vadd.f32 %v692, %v724
  %v741 = vadd.f32 %v693, %v725
  %v742 = vadd.f32 %v694, %v726
  %v743 = vadd.f32 %v695, %v727
  %v744 = vadd.f32 %v696, %v728
  %v745 = vadd.f32 %v697, %v729
  %v746 = vadd.f32 %v698, %v730
  %v747 = vadd.f32 %v699, %v731
  %v748 = vadd.f32 %v700, %v732
  %v749 = vadd.f32 %v701, %v733
  %v750 = vadd.f32 %v702, %v734
  %v751 = vadd.f32 %v703, %v735
  %v752 = vadd.f32 %v704, %v736
  %v753 = vadd.f32 %v705, %v737
  %s754 = sadd.s32 8, 1
  %s755 = smul.u32 %s754, 24
  %s756 = scalar_lea.vmem [#allocation2], %s755
  %v757 = vld [vmem:[%s756] sm:$0xff]
  %v758 = vld [vmem:[%s756 + $0x8] sm:$0xff]
  %v759 = vld [vmem:[%s756 + $0x18] sm:$0xff]
  %v760 = vld [vmem:[%s756 + $0x20] sm:$0xff]
  %v761 = vld [vmem:[%s756 + $0x30] sm:$0xff]
  %v762 = vld [vmem:[%s756 + $0x38] sm:$0xff]
  %v763 = vld [vmem:[%s756 + $0x48] sm:$0xff]
  %v764 = vld [vmem:[%s756 + $0x50] sm:$0xff]
  %v765 = vld [vmem:[%s756 + $0x60] sm:$0xff]
  %v766 = vld [vmem:[%s756 + $0x68] sm:$0xff]
  %v767 = vld [vmem:[%s756 + $0x78] sm:$0xff]
  %v768 = vld [vmem:[%s756 + $0x80] sm:$0xff]
  %v769 = vld [vmem:[%s756 + $0x90] sm:$0xff]
  %v770 = vld [vmem:[%s756 + $0x98] sm:$0xff]
  %v771 = vld [vmem:[%s756 + $0xa8] sm:$0xff]
  %v772 = vld [vmem:[%s756 + $0xb0] sm:$0xff]
  %v773 = vmul.f32 %v757, %v294
  %v774 = vmul.f32 %v758, %v294
  %v775 = vmul.f32 %v759, %v294
  %v776 = vmul.f32 %v760, %v294
  %v777 = vmul.f32 %v761, %v294
  %v778 = vmul.f32 %v762, %v294
  %v779 = vmul.f32 %v763, %v294
  %v780 = vmul.f32 %v764, %v294
  %v781 = vmul.f32 %v765, %v294
  %v782 = vmul.f32 %v766, %v294
  %v783 = vmul.f32 %v767, %v294
  %v784 = vmul.f32 %v768, %v294
  %v785 = vmul.f32 %v769, %v294
  %v786 = vmul.f32 %v770, %v294
  %v787 = vmul.f32 %v771, %v294
  %v788 = vmul.f32 %v772, %v294
  %v789 = vadd.f32 %v738, %v773
  %v790 = vadd.f32 %v739, %v774
  %v791 = vadd.f32 %v740, %v775
  %v792 = vadd.f32 %v741, %v776
  %v793 = vadd.f32 %v742, %v777
  %v794 = vadd.f32 %v743, %v778
  %v795 = vadd.f32 %v744, %v779
  %v796 = vadd.f32 %v745, %v780
  %v797 = vadd.f32 %v746, %v781
  %v798 = vadd.f32 %v747, %v782
  %v799 = vadd.f32 %v748, %v783
  %v800 = vadd.f32 %v749, %v784
  %v801 = vadd.f32 %v750, %v785
  %v802 = vadd.f32 %v751, %v786
  %v803 = vadd.f32 %v752, %v787
  %v804 = vadd.f32 %v753, %v788
  %v805 = vld [vmem:[%s756 + $0x1] sm:$0xff]
  %v806 = vld [vmem:[%s756 + $0x9] sm:$0xff]
  %v807 = vld [vmem:[%s756 + $0x19] sm:$0xff]
  %v808 = vld [vmem:[%s756 + $0x21] sm:$0xff]
  %v809 = vld [vmem:[%s756 + $0x31] sm:$0xff]
  %v810 = vld [vmem:[%s756 + $0x39] sm:$0xff]
  %v811 = vld [vmem:[%s756 + $0x49] sm:$0xff]
  %v812 = vld [vmem:[%s756 + $0x51] sm:$0xff]
  %v813 = vld [vmem:[%s756 + $0x61] sm:$0xff]
  %v814 = vld [vmem:[%s756 + $0x69] sm:$0xff]
  %v815 = vld [vmem:[%s756 + $0x79] sm:$0xff]
  %v816 = vld [vmem:[%s756 + $0x81] sm:$0xff]
  %v817 = vld [vmem:[%s756 + $0x91] sm:$0xff]
  %v818 = vld [vmem:[%s756 + $0x99] sm:$0xff]
  %v819 = vld [vmem:[%s756 + $0xa9] sm:$0xff]
  %v820 = vld [vmem:[%s756 + $0xb1] sm:$0xff]
  %v821 = vmul.f32 %v805, %v346
  %v822 = vmul.f32 %v806, %v346
  %v823 = vmul.f32 %v807, %v346
  %v824 = vmul.f32 %v808, %v346
  %v825 = vmul.f32 %v809, %v346
  %v826 = vmul.f32 %v810, %v346
  %v827 = vmul.f32 %v811, %v346
  %v828 = vmul.f32 %v812, %v346
  %v829 = vmul.f32 %v813, %v346
  %v830 = vmul.f32 %v814, %v346
  %v831 = vmul.f32 %v815, %v346
  %v832 = vmul.f32 %v816, %v346
  %v833 = vmul.f32 %v817, %v346
  %v834 = vmul.f32 %v818, %v346
  %v835 = vmul.f32 %v819, %v346
  %v836 = vmul.f32 %v820, %v346
  %v837 = vadd.f32 %v789, %v821
  %v838 = vadd.f32 %v790, %v822
  %v839 = vadd.f32 %v791, %v823
  %v840 = vadd.f32 %v792, %v824
  %v841 = vadd.f32 %v793, %v825
  %v842 = vadd.f32 %v794, %v826
  %v843 = vadd.f32 %v795, %v827
  %v844 = vadd.f32 %v796, %v828
  %v845 = vadd.f32 %v797, %v829
  %v846 = vadd.f32 %v798, %v830
  %v847 = vadd.f32 %v799, %v831
  %v848 = vadd.f32 %v800, %v832
  %v849 = vadd.f32 %v801, %v833
  %v850 = vadd.f32 %v802, %v834
  %v851 = vadd.f32 %v803, %v835
  %v852 = vadd.f32 %v804, %v836
  %v853 = vld [vmem:[%s756 + $0x2] sm:$0xff]
  %v854 = vld [vmem:[%s756 + $0xa] sm:$0xff]
  %v855 = vld [vmem:[%s756 + $0x1a] sm:$0xff]
  %v856 = vld [vmem:[%s756 + $0x22] sm:$0xff]
  %v857 = vld [vmem:[%s756 + $0x32] sm:$0xff]
  %v858 = vld [vmem:[%s756 + $0x3a] sm:$0xff]
  %v859 = vld [vmem:[%s756 + $0x4a] sm:$0xff]
  %v860 = vld [vmem:[%s756 + $0x52] sm:$0xff]
  %v861 = vld [vmem:[%s756 + $0x62] sm:$0xff]
  %v862 = vld [vmem:[%s756 + $0x6a] sm:$0xff]
  %v863 = vld [vmem:[%s756 + $0x7a] sm:$0xff]
  %v864 = vld [vmem:[%s756 + $0x82] sm:$0xff]
  %v865 = vld [vmem:[%s756 + $0x92] sm:$0xff]
  %v866 = vld [vmem:[%s756 + $0x9a] sm:$0xff]
  %v867 = vld [vmem:[%s756 + $0xaa] sm:$0xff]
  %v868 = vld [vmem:[%s756 + $0xb2] sm:$0xff]
  %v869 = vmul.f32 %v853, %v398
  %v870 = vmul.f32 %v854, %v398
  %v871 = vmul.f32 %v855, %v398
  %v872 = vmul.f32 %v856, %v398
  %v873 = vmul.f32 %v857, %v398
  %v874 = vmul.f32 %v858, %v398
  %v875 = vmul.f32 %v859, %v398
  %v876 = vmul.f32 %v860, %v398
  %v877 = vmul.f32 %v861, %v398
  %v878 = vmul.f32 %v862, %v398
  %v879 = vmul.f32 %v863, %v398
  %v880 = vmul.f32 %v864, %v398
  %v881 = vmul.f32 %v865, %v398
  %v882 = vmul.f32 %v866, %v398
  %v883 = vmul.f32 %v867, %v398
  %v884 = vmul.f32 %v868, %v398
  %v885 = vadd.f32 %v837, %v869
  %v886 = vadd.f32 %v838, %v870
  %v887 = vadd.f32 %v839, %v871
  %v888 = vadd.f32 %v840, %v872
  %v889 = vadd.f32 %v841, %v873
  %v890 = vadd.f32 %v842, %v874
  %v891 = vadd.f32 %v843, %v875
  %v892 = vadd.f32 %v844, %v876
  %v893 = vadd.f32 %v845, %v877
  %v894 = vadd.f32 %v846, %v878
  %v895 = vadd.f32 %v847, %v879
  %v896 = vadd.f32 %v848, %v880
  %v897 = vadd.f32 %v849, %v881
  %v898 = vadd.f32 %v850, %v882
  %v899 = vadd.f32 %v851, %v883
  %v900 = vadd.f32 %v852, %v884
  %s901 = sadd.s32 8, 2
  %s902 = smul.u32 %s901, 24
  %s903 = scalar_lea.vmem [#allocation2], %s902
  %v904 = vld [vmem:[%s903] sm:$0xff]
  %v905 = vld [vmem:[%s903 + $0x8] sm:$0xff]
  %v906 = vld [vmem:[%s903 + $0x18] sm:$0xff]
  %v907 = vld [vmem:[%s903 + $0x20] sm:$0xff]
  %v908 = vld [vmem:[%s903 + $0x30] sm:$0xff]
  %v909 = vld [vmem:[%s903 + $0x38] sm:$0xff]
  %v910 = vld [vmem:[%s903 + $0x48] sm:$0xff]
  %v911 = vld [vmem:[%s903 + $0x50] sm:$0xff]
  %v912 = vld [vmem:[%s903 + $0x60] sm:$0xff]
  %v913 = vld [vmem:[%s903 + $0x68] sm:$0xff]
  %v914 = vld [vmem:[%s903 + $0x78] sm:$0xff]
  %v915 = vld [vmem:[%s903 + $0x80] sm:$0xff]
  %v916 = vld [vmem:[%s903 + $0x90] sm:$0xff]
  %v917 = vld [vmem:[%s903 + $0x98] sm:$0xff]
  %v918 = vld [vmem:[%s903 + $0xa8] sm:$0xff]
  %v919 = vld [vmem:[%s903 + $0xb0] sm:$0xff]
  %v920 = vmul.f32 %v904, %v453
  %v921 = vmul.f32 %v905, %v453
  %v922 = vmul.f32 %v906, %v453
  %v923 = vmul.f32 %v907, %v453
  %v924 = vmul.f32 %v908, %v453
  %v925 = vmul.f32 %v909, %v453
  %v926 = vmul.f32 %v910, %v453
  %v927 = vmul.f32 %v911, %v453
  %v928 = vmul.f32 %v912, %v453
  %v929 = vmul.f32 %v913, %v453
  %v930 = vmul.f32 %v914, %v453
  %v931 = vmul.f32 %v915, %v453
  %v932 = vmul.f32 %v916, %v453
  %v933 = vmul.f32 %v917, %v453
  %v934 = vmul.f32 %v918, %v453
  %v935 = vmul.f32 %v919, %v453
  %v936 = vadd.f32 %v885, %v920
  %v937 = vadd.f32 %v886, %v921
  %v938 = vadd.f32 %v887, %v922
  %v939 = vadd.f32 %v888, %v923
  %v940 = vadd.f32 %v889, %v924
  %v941 = vadd.f32 %v890, %v925
  %v942 = vadd.f32 %v891, %v926
  %v943 = vadd.f32 %v892, %v927
  %v944 = vadd.f32 %v893, %v928
  %v945 = vadd.f32 %v894, %v929
  %v946 = vadd.f32 %v895, %v930
  %v947 = vadd.f32 %v896, %v931
  %v948 = vadd.f32 %v897, %v932
  %v949 = vadd.f32 %v898, %v933
  %v950 = vadd.f32 %v899, %v934
  %v951 = vadd.f32 %v900, %v935
  %v952 = vld [vmem:[%s903 + $0x1] sm:$0xff]
  %v953 = vld [vmem:[%s903 + $0x9] sm:$0xff]
  %v954 = vld [vmem:[%s903 + $0x19] sm:$0xff]
  %v955 = vld [vmem:[%s903 + $0x21] sm:$0xff]
  %v956 = vld [vmem:[%s903 + $0x31] sm:$0xff]
  %v957 = vld [vmem:[%s903 + $0x39] sm:$0xff]
  %v958 = vld [vmem:[%s903 + $0x49] sm:$0xff]
  %v959 = vld [vmem:[%s903 + $0x51] sm:$0xff]
  %v960 = vld [vmem:[%s903 + $0x61] sm:$0xff]
  %v961 = vld [vmem:[%s903 + $0x69] sm:$0xff]
  %v962 = vld [vmem:[%s903 + $0x79] sm:$0xff]
  %v963 = vld [vmem:[%s903 + $0x81] sm:$0xff]
  %v964 = vld [vmem:[%s903 + $0x91] sm:$0xff]
  %v965 = vld [vmem:[%s903 + $0x99] sm:$0xff]
  %v966 = vld [vmem:[%s903 + $0xa9] sm:$0xff]
  %v967 = vld [vmem:[%s903 + $0xb1] sm:$0xff]
  %v968 = vmul.f32 %v952, %v505
  %v969 = vmul.f32 %v953, %v505
  %v970 = vmul.f32 %v954, %v505
  %v971 = vmul.f32 %v955, %v505
  %v972 = vmul.f32 %v956, %v505
  %v973 = vmul.f32 %v957, %v505
  %v974 = vmul.f32 %v958, %v505
  %v975 = vmul.f32 %v959, %v505
  %v976 = vmul.f32 %v960, %v505
  %v977 = vmul.f32 %v961, %v505
  %v978 = vmul.f32 %v962, %v505
  %v979 = vmul.f32 %v963, %v505
  %v980 = vmul.f32 %v964, %v505
  %v981 = vmul.f32 %v965, %v505
  %v982 = vmul.f32 %v966, %v505
  %v983 = vmul.f32 %v967, %v505
  %v984 = vadd.f32 %v936, %v968
  %v985 = vadd.f32 %v937, %v969
  %v986 = vadd.f32 %v938, %v970
  %v987 = vadd.f32 %v939, %v971
  %v988 = vadd.f32 %v940, %v972
  %v989 = vadd.f32 %v941, %v973
  %v990 = vadd.f32 %v942, %v974
  %v991 = vadd.f32 %v943, %v975
  %v992 = vadd.f32 %v944, %v976
  %v993 = vadd.f32 %v945, %v977
  %v994 = vadd.f32 %v946, %v978
  %v995 = vadd.f32 %v947, %v979
  %v996 = vadd.f32 %v948, %v980
  %v997 = vadd.f32 %v949, %v981
  %v998 = vadd.f32 %v950, %v982
  %v999 = vadd.f32 %v951, %v983
  %v1000 = vld [vmem:[%s903 + $0x2] sm:$0xff]
  %v1001 = vld [vmem:[%s903 + $0xa] sm:$0xff]
  %v1002 = vld [vmem:[%s903 + $0x1a] sm:$0xff]
  %v1003 = vld [vmem:[%s903 + $0x22] sm:$0xff]
  %v1004 = vld [vmem:[%s903 + $0x32] sm:$0xff]
  %v1005 = vld [vmem:[%s903 + $0x3a] sm:$0xff]
  %v1006 = vld [vmem:[%s903 + $0x4a] sm:$0xff]
  %v1007 = vld [vmem:[%s903 + $0x52] sm:$0xff]
  %v1008 = vld [vmem:[%s903 + $0x62] sm:$0xff]
  %v1009 = vld [vmem:[%s903 + $0x6a] sm:$0xff]
  %v1010 = vld [vmem:[%s903 + $0x7a] sm:$0xff]
  %v1011 = vld [vmem:[%s903 + $0x82] sm:$0xff]
  %v1012 = vld [vmem:[%s903 + $0x92] sm:$0xff]
  %v1013 = vld [vmem:[%s903 + $0x9a] sm:$0xff]
  %v1014 = vld [vmem:[%s903 + $0xaa] sm:$0xff]
  %v1015 = vld [vmem:[%s903 + $0xb2] sm:$0xff]
  %v1016 = vmul.f32 %v1000, %v557
  %v1017 = vmul.f32 %v1001, %v557
  %v1018 = vmul.f32 %v1002, %v557
  %v1019 = vmul.f32 %v1003, %v557
  %v1020 = vmul.f32 %v1004, %v557
  %v1021 = vmul.f32 %v1005, %v557
  %v1022 = vmul.f32 %v1006, %v557
  %v1023 = vmul.f32 %v1007, %v557
  %v1024 = vmul.f32 %v1008, %v557
  %v1025 = vmul.f32 %v1009, %v557
  %v1026 = vmul.f32 %v1010, %v557
  %v1027 = vmul.f32 %v1011, %v557
  %v1028 = vmul.f32 %v1012, %v557
  %v1029 = vmul.f32 %v1013, %v557
  %v1030 = vmul.f32 %v1014, %v557
  %v1031 = vmul.f32 %v1015, %v557
  %v1032 = vadd.f32 %v984, %v1016
  %v1033 = vadd.f32 %v985, %v1017
  %v1034 = vadd.f32 %v986, %v1018
  %v1035 = vadd.f32 %v987, %v1019
  %v1036 = vadd.f32 %v988, %v1020
  %v1037 = vadd.f32 %v989, %v1021
  %v1038 = vadd.f32 %v990, %v1022
  %v1039 = vadd.f32 %v991, %v1023
  %v1040 = vadd.f32 %v992, %v1024
  %v1041 = vadd.f32 %v993, %v1025
  %v1042 = vadd.f32 %v994, %v1026
  %v1043 = vadd.f32 %v995, %v1027
  %v1044 = vadd.f32 %v996, %v1028
  %v1045 = vadd.f32 %v997, %v1029
  %v1046 = vadd.f32 %v998, %v1030
  %v1047 = vadd.f32 %v999, %v1031
  %s1048 = smul.u32 8, 16
  %s1049 = scalar_lea.vmem %s2, %s1048
  %1050 = vst [vmem:[%s1049] sm:$0xff] %v1032
  %1051 = vst [vmem:[%s1049 + $0x8] sm:$0xff] %v1033
  %1052 = vst [vmem:[%s1049 + $0x10] sm:$0xff] %v1034
  %1053 = vst [vmem:[%s1049 + $0x18] sm:$0xff] %v1035
  %1054 = vst [vmem:[%s1049 + $0x20] sm:$0xff] %v1036
  %1055 = vst [vmem:[%s1049 + $0x28] sm:$0xff] %v1037
  %1056 = vst [vmem:[%s1049 + $0x30] sm:$0xff] %v1038
  %1057 = vst [vmem:[%s1049 + $0x38] sm:$0xff] %v1039
  %1058 = vst [vmem:[%s1049 + $0x40] sm:$0xff] %v1040
  %1059 = vst [vmem:[%s1049 + $0x48] sm:$0xff] %v1041
  %1060 = vst [vmem:[%s1049 + $0x50] sm:$0xff] %v1042
  %1061 = vst [vmem:[%s1049 + $0x58] sm:$0xff] %v1043
  %1062 = vst [vmem:[%s1049 + $0x60] sm:$0xff] %v1044
  %1063 = vst [vmem:[%s1049 + $0x68] sm:$0xff] %v1045
  %1064 = vst [vmem:[%s1049 + $0x70] sm:$0xff] %v1046
  %1065 = vst [vmem:[%s1049 + $0x78] sm:$0xff] %v1047
  // Predicated region
  $region10: #{invconv_forward.1} parent=0 // pred_check
    _
  $region11: #{invconv_forward.1} parent=0 // pred_check_branch
    %1067 = sbr.rel (0) target = $region13
  $region12: #{invconv_forward.1} parent=0 // pred_region
    _
  $region13: #{invconv_forward.1} parent=0 // pred_fallthru
    _
  // Predicated region
  $region14: #{invconv_forward.1} parent=0 // pred_check
    _
  $region15: #{invconv_forward.1} parent=0 // pred_check_branch
    %1069 = sbr.rel (0) target = $region17
  $region16: #{invconv_forward.1} parent=0 // pred_region
    _
  $region17: #{invconv_forward.1} parent=0 // pred_fallthru
    _
  // Predicated region
  $region18: #{invconv_forward.1} parent=0 // pred_check
    _
  $region19: #{invconv_forward.1} parent=0 // pred_check_branch
    %1071 = sbr.rel (0) target = $region21
  $region20: #{invconv_forward.1} parent=0 // pred_region
    _
  $region21: #{invconv_forward.1} parent=0 // pred_fallthru
    _
  // Predicated region
  $region22: #{invconv_forward.1} parent=0 // pred_check
    _
  $region23: #{invconv_forward.1} parent=0 // pred_check_branch
    %1073 = sbr.rel (0) target = $region25
  $region24: #{invconv_forward.1} parent=0 // pred_region
    _
  $region25: #{invconv_forward.1} parent=0 // pred_fallthru
    _

</llo_original>
